<compile_context>
chip_gen: v7x
topology: tpu7x:2x2x1
jax: 0.10.0
libtpu: 0.0.40
codegen_flags: <defaults>
</compile_context>

<pallas_src>
import functools
import math

import jax
import jax.numpy as jnp
from jax.experimental import pallas as pl
from jax.experimental.pallas import tpu as pltpu

_EPS = 1e-5


# ----------------------------------------------------------------------------
# Kernels
# ----------------------------------------------------------------------------
def _ln_kernel_plain(x_ref, w_ref, b_ref, o_ref, *, c):
    # x_ref: (TR, C), w_ref/b_ref: (1, C), o_ref: (TR, C)
    x = x_ref[...].astype(jnp.float32)
    inv_c = 1.0 / float(c)
    mu = jnp.sum(x, axis=-1, keepdims=True) * inv_c               # (TR, 1)
    xc = x - mu
    var = jnp.sum(xc * xc, axis=-1, keepdims=True) * inv_c        # biased
    inv_sigma = jax.lax.rsqrt(var + _EPS)                         # EUP rsqrt
    o_ref[...] = (xc * inv_sigma * w_ref[...] + b_ref[...]).astype(o_ref.dtype)


def _ln_kernel_packed(x_ref, w_ref, b_ref, seg_ref, o_ref, *, c):
    # x_ref: (TR, CP) -- P independent C-channel rows packed along the lanes.
    # seg_ref: (CP, CP) block-diagonal ones; x @ seg produces per-segment sums
    # already broadcast back across each segment's lanes (idle-MXU trick).
    x = x_ref[...].astype(jnp.float32)
    seg = seg_ref[...]
    inv_c = 1.0 / float(c)
    mu = jnp.dot(x, seg, preferred_element_type=jnp.float32,
                 precision=jax.lax.Precision.HIGHEST) * inv_c      # (TR, CP)
    xc = x - mu
    var = jnp.dot(xc * xc, seg, preferred_element_type=jnp.float32,
                  precision=jax.lax.Precision.HIGHEST) * inv_c
    inv_sigma = jax.lax.rsqrt(var + _EPS)
    o_ref[...] = (xc * inv_sigma * w_ref[...] + b_ref[...]).astype(o_ref.dtype)


# ----------------------------------------------------------------------------
# Tiling helpers
# ----------------------------------------------------------------------------
def _sublane_multiple(dtype):
    """Minimum sublane tiling for this dtype (8 f32 / 16 bf16 / 32 int8+fp8)."""
    bits = jnp.dtype(dtype).itemsize * 8
    if bits >= 32:
        return 8
    if bits == 16:
        return 16
    return 32


def _pick_block_rows(rows, row_bytes, sublane, target_tile_bytes=2 << 20):
    """Row-tile size: ~target_tile_bytes per input tile, a multiple of the
    dtype sublane tiling, at least two grid steps when possible (v7x megacore
    / pipeline overlap), and an exact divisor of `rows` when one exists.
    Returns (block_rows, need_pad)."""
    if rows <= sublane:
        return rows, False  # full-extent block (allowed even when < sublane)
    cap = max(sublane,
              (target_tile_bytes // max(row_bytes, 1)) // sublane * sublane)
    half = (rows // 2) // sublane * sublane      # keep >= 2 grid steps
    if half >= sublane:
        cap = min(cap, half)
    cap = min(cap, max(sublane, rows // sublane * sublane))
    for br in range(cap, sublane - 1, -sublane):
        if rows % br == 0:
            return br, False
    return cap, True  # no exact divisor: caller pads rows up to a multiple


# ----------------------------------------------------------------------------
# Wrapper
# ----------------------------------------------------------------------------
def withbias_layernorm_pallas(x, weight, bias, *, target_tile_bytes=2 << 20):
    """x: (..., C); weight, bias: (C,). Returns same shape/dtype as x."""
    orig_shape = x.shape
    C = orig_shape[-1]
    rows = int(math.prod(orig_shape[:-1])) if len(orig_shape) > 1 else 1

    x2 = x.reshape(rows, C)
    w2 = weight.astype(jnp.float32).reshape(1, C)
    b2 = bias.astype(jnp.float32).reshape(1, C)

    # Lane packing: if C < 128 and divides 128, pack P = 128 // C rows into one
    # 128-lane row so stores are unmasked and vregs/DMAs are lane-dense.
    pack = 1
    if C < 128 and 128 % C == 0 and rows % (128 // C) == 0:
        pack = 128 // C

    dtype_bytes = jnp.dtype(x.dtype).itemsize
    sublane = _sublane_multiple(x.dtype)

    if pack > 1:
        rows_p = rows // pack
        CP = C * pack  # == 128
        xp = x2.reshape(rows_p, CP)                       # free metadata reshape
        wp = jnp.tile(w2, (1, pack))
        bp = jnp.tile(b2, (1, pack))
        seg = jnp.kron(jnp.eye(pack, dtype=jnp.float32),
                       jnp.ones((C, C), jnp.float32))     # (CP, CP) block-diag

        block_rows, need_pad = _pick_block_rows(
            rows_p, CP * dtype_bytes, sublane, target_tile_bytes)
        rows_run = rows_p
        if need_pad:
            rows_run = ((rows_p + block_rows - 1) // block_rows) * block_rows
            xp = jnp.pad(xp, ((0, rows_run - rows_p), (0, 0)))
        grid = (rows_run // block_rows,)

        out = pl.pallas_call(
            functools.partial(_ln_kernel_packed, c=C),
            out_shape=jax.ShapeDtypeStruct((rows_run, CP), x.dtype),
            grid_spec=pltpu.PrefetchScalarGridSpec(
                num_scalar_prefetch=0,
                grid=grid,
                in_specs=[
                    pl.BlockSpec((block_rows, CP), lambda i: (i, 0)),  # x tile
                    pl.BlockSpec((1, CP), lambda i: (0, 0)),           # weight
                    pl.BlockSpec((1, CP), lambda i: (0, 0)),           # bias
                    pl.BlockSpec((CP, CP), lambda i: (0, 0)),          # seg ones
                ],
                out_specs=pl.BlockSpec((block_rows, CP), lambda i: (i, 0)),
            ),
            compiler_params=pltpu.CompilerParams(
                dimension_semantics=("parallel",)),
        )(xp, wp, bp, seg)
        if need_pad:
            out = out[:rows_p]
        return out.reshape(orig_shape)

    # Generic path: channel axis stays the lane axis (full extent allowed even
    # when not a multiple of 128, e.g. C = 96).
    block_rows, need_pad = _pick_block_rows(
        rows, C * dtype_bytes, sublane, target_tile_bytes)
    rows_run = rows
    if need_pad:
        rows_run = ((rows + block_rows - 1) // block_rows) * block_rows
        x2 = jnp.pad(x2, ((0, rows_run - rows), (0, 0)))
    grid = (rows_run // block_rows,)

    out = pl.pallas_call(
        functools.partial(_ln_kernel_plain, c=C),
        out_shape=jax.ShapeDtypeStruct((rows_run, C), x.dtype),
        grid_spec=pltpu.PrefetchScalarGridSpec(
            num_scalar_prefetch=0,
            grid=grid,
            in_specs=[
                pl.BlockSpec((block_rows, C), lambda i: (i, 0)),   # x tile
                pl.BlockSpec((1, C), lambda i: (0, 0)),            # weight
                pl.BlockSpec((1, C), lambda i: (0, 0)),            # bias
            ],
            out_specs=pl.BlockSpec((block_rows, C), lambda i: (i, 0)),
        ),
        compiler_params=pltpu.CompilerParams(
            dimension_semantics=("parallel",)),
    )(x2, w2, b2)
    if need_pad:
        out = out[:rows]
    return out.reshape(orig_shape)


def withbias_layernorm_ref(x, weight, bias):
    """Pure-JAX reference mirroring the PyTorch forward (f32 compute)."""
    xf = x.astype(jnp.float32)
    mu = jnp.mean(xf, axis=-1, keepdims=True)
    var = jnp.mean((xf - mu) ** 2, axis=-1, keepdims=True)   # unbiased=False
    return ((xf - mu) / jnp.sqrt(var + 1e-5)
            * weight.astype(jnp.float32) + bias.astype(jnp.float32))


if __name__ == "__main__":
    key = jax.random.PRNGKey(0)

    # ---- Main check: the actual CSCANet usage shape, C = 64 (packed path) ----
    B, HW, C = 2, 16 * 16, 64
    kx, kw, kb, kx2 = jax.random.split(key, 4)
    x = jax.random.normal(kx, (B, HW, C), jnp.float32)
    weight = 1.0 + 0.1 * jax.random.normal(kw, (C,), jnp.float32)
    bias = 0.1 * jax.random.normal(kb, (C,), jnp.float32)

    out = jax.block_until_ready(withbias_layernorm_pallas(x, weight, bias))
    ref = jax.block_until_ready(withbias_layernorm_ref(x, weight, bias))
    assert out.shape == x.shape
    assert jnp.allclose(out, ref, rtol=1e-4, atol=1e-4), float(
        jnp.max(jnp.abs(out - ref)))

    # ---- Secondary check: C >= 128 exercises the generic (unpacked) path ----
    C2 = 256
    x_b = jax.random.normal(kx2, (2, 8, C2), jnp.float32)
    w_b = jnp.ones((C2,), jnp.float32)
    b_b = jnp.zeros((C2,), jnp.float32)
    out_b = jax.block_until_ready(withbias_layernorm_pallas(x_b, w_b, b_b))
    ref_b = withbias_layernorm_ref(x_b, w_b, b_b)
    assert jnp.allclose(out_b, ref_b, rtol=1e-4, atol=1e-4)

    # ---- bf16 check: native-dtype DMA + 16-row sublane tiling ----
    x_h = x.astype(jnp.bfloat16)
    out_h = jax.block_until_ready(
        withbias_layernorm_pallas(x_h, weight, bias)).astype(jnp.float32)
    ref_h = withbias_layernorm_ref(x_h, weight, bias)
    assert jnp.allclose(out_h, ref_h, rtol=2e-2, atol=2e-2)

    print("KERNEL_OK")
</pallas_src>

<mosaic_0001>
module attributes {stable_mosaic.version = 11 : i64} {
  func.func @_ln_kernel_packed(%arg0: i32, %arg1: memref<128x128xf32, #tpu.memory_space<vmem>>, %arg2: memref<1x128xf32, #tpu.memory_space<vmem>>, %arg3: memref<1x128xf32, #tpu.memory_space<vmem>>, %arg4: memref<128x128xf32, #tpu.memory_space<vmem>>, %arg5: memref<128x128xf32, #tpu.memory_space<vmem>>) attributes {dimension_semantics = [#tpu.dimension_semantics<parallel>], iteration_bounds = array<i64: 2>, scalar_prefetch = 0 : i64, scratch_operands = 0 : i64, tpu.core_type = #tpu.core_type<tc>, window_params = [{transform_indices = @transform_0, window_bounds = array<i64: 128, 128>}, {pipeline_mode = #tpu.pipeline_mode<synchronous>, transform_indices = @transform_1, window_bounds = array<i64: 1, 128>}, {pipeline_mode = #tpu.pipeline_mode<synchronous>, transform_indices = @transform_2, window_bounds = array<i64: 1, 128>}, {pipeline_mode = #tpu.pipeline_mode<synchronous>, transform_indices = @transform_3, window_bounds = array<i64: 128, 128>}, {transform_indices = @transform_4, window_bounds = array<i64: 128, 128>}]} {
    %c0 = arith.constant 0 : index
    %c0_0 = arith.constant 0 : index
    %0 = vector.load %arg1[%c0, %c0_0] : memref<128x128xf32, #tpu.memory_space<vmem>>, vector<128x128xf32>
    %c0_1 = arith.constant 0 : index
    %c0_2 = arith.constant 0 : index
    %1 = vector.load %arg4[%c0_1, %c0_2] : memref<128x128xf32, #tpu.memory_space<vmem>>, vector<128x128xf32>
    %cst = arith.constant dense<0.000000e+00> : vector<128x128xf32>
    %2 = tpu.matmul %0, %1, %cst {dimension_numbers = #tpu.dot_dimension_numbers<[1], [0], [0], [1], [0, 0, 1, 1], [], []>, precision = #tpu.contract_precision<fp32>} : vector<128x128xf32>, vector<128x128xf32>, vector<128x128xf32> -> vector<128x128xf32>
    %cst_3 = arith.constant 1.562500e-02 : f32
    %3 = vector.broadcast %cst_3 : f32 to vector<128x128xf32>
    %4 = arith.mulf %2, %3 : vector<128x128xf32>
    %5 = arith.subf %0, %4 : vector<128x128xf32>
    %6 = arith.mulf %5, %5 : vector<128x128xf32>
    %cst_4 = arith.constant dense<0.000000e+00> : vector<128x128xf32>
    %7 = tpu.matmul %6, %1, %cst_4 {dimension_numbers = #tpu.dot_dimension_numbers<[1], [0], [0], [1], [0, 0, 1, 1], [], []>, precision = #tpu.contract_precision<fp32>} : vector<128x128xf32>, vector<128x128xf32>, vector<128x128xf32> -> vector<128x128xf32>
    %cst_5 = arith.constant 1.562500e-02 : f32
    %8 = vector.broadcast %cst_5 : f32 to vector<128x128xf32>
    %9 = arith.mulf %7, %8 : vector<128x128xf32>
    %cst_6 = arith.constant 9.99999974E-6 : f32
    %10 = vector.broadcast %cst_6 : f32 to vector<128x128xf32>
    %11 = arith.addf %9, %10 : vector<128x128xf32>
    %12 = math.rsqrt %11 : vector<128x128xf32>
    %13 = arith.mulf %5, %12 : vector<128x128xf32>
    %c0_7 = arith.constant 0 : index
    %c0_8 = arith.constant 0 : index
    %14 = vector.load %arg2[%c0_7, %c0_8] : memref<1x128xf32, #tpu.memory_space<vmem>>, vector<1x128xf32>
    %15 = vector.broadcast %14 : vector<1x128xf32> to vector<128x128xf32>
    %16 = arith.mulf %13, %15 : vector<128x128xf32>
    %c0_9 = arith.constant 0 : index
    %c0_10 = arith.constant 0 : index
    %17 = vector.load %arg3[%c0_9, %c0_10] : memref<1x128xf32, #tpu.memory_space<vmem>>, vector<1x128xf32>
    %18 = vector.broadcast %17 : vector<1x128xf32> to vector<128x128xf32>
    %19 = arith.addf %16, %18 : vector<128x128xf32>
    %c0_11 = arith.constant 0 : index
    %c0_12 = arith.constant 0 : index
    %20 = vector.load %arg5[%c0_11, %c0_12] : memref<128x128xf32, #tpu.memory_space<vmem>>, vector<128x128xf32>
    tpu.vector_store %arg5[%c0_11, %c0_12], %19 {strides = array<i32>} : memref<128x128xf32, #tpu.memory_space<vmem>>, vector<128x128xf32>,
    return
  }
  func.func @transform_0(%arg0: i32) -> (i32, i32) {
    %c0_i32 = arith.constant 0 : i32
    %c0_i32_0 = arith.constant 0 : i32
    return %arg0, %c0_i32 : i32, i32
  }
  func.func @transform_1(%arg0: i32) -> (i32, i32) {
    %c0_i32 = arith.constant 0 : i32
    %c0_i32_0 = arith.constant 0 : i32
    %c0_i32_1 = arith.constant 0 : i32
    return %c0_i32, %c0_i32_0 : i32, i32
  }
  func.func @transform_2(%arg0: i32) -> (i32, i32) {
    %c0_i32 = arith.constant 0 : i32
    %c0_i32_0 = arith.constant 0 : i32
    %c0_i32_1 = arith.constant 0 : i32
    return %c0_i32, %c0_i32_0 : i32, i32
  }
  func.func @transform_3(%arg0: i32) -> (i32, i32) {
    %c0_i32 = arith.constant 0 : i32
    %c0_i32_0 = arith.constant 0 : i32
    %c0_i32_1 = arith.constant 0 : i32
    return %c0_i32, %c0_i32_0 : i32, i32
  }
  func.func @transform_4(%arg0: i32) -> (i32, i32) {
    %c0_i32 = arith.constant 0 : i32
    %c0_i32_0 = arith.constant 0 : i32
    return %arg0, %c0_i32 : i32, i32
  }
}

</mosaic_0001>

<llo_original>
// kernel: tpu_custom_call.1
$region0: #{tpu_custom_call.1}
  #allocation0 [shape = 'u32[]', space=smem, size = 0x4, offset = 0x4, fixed_abs, tag = 'smem constant byte address 0x4 - core index']
  #allocation1 [shape = 'u32[144,128]{1,0:T(1,128)}', space=vmem, size = 0x12000, scoped, tag = 'internal scratch']
  %s0 = inlined_call_operand.hbm [shape: f32[256,128], index: 0, kind: input, shape index: {}]
  %s1 = inlined_call_operand.vmem [shape: f32[1,128], index: 1, kind: input, shape index: {}]
  %s2 = inlined_call_operand.vmem [shape: f32[1,128], index: 2, kind: input, shape index: {}]
  %s3 = inlined_call_operand.hbm [shape: f32[128,128], index: 3, kind: input, shape index: {}]
  %s4 = inlined_call_operand.hbm [shape: f32[256,128], index: 4, kind: output, shape index: {}]
  %s5 = sld [smem:[#allocation0]]
  $region57: #{tpu_custom_call.1} parent=0
    _
  %s7 = ssub.s32 1, %s5
  %s8 = scalar_select 0, %s7, %s5
  $region1: #{tpu_custom_call.1} parent=0
    #allocation2 [shape = 'u8[131072]{0}', space=vmem, size = 0x20000, scoped, tag = 'input window, operand 0']
    #allocation3 [shape = 's32[2]{0}', space=sflag, size = 0x8, scoped, tag = 'scoped memory for tpu_custom_call.1']
    #allocation4 [shape = 's32[2]{0}', space=sflag, size = 0x8, scoped, tag = 'scoped memory for tpu_custom_call.1']
    #allocation5 [shape = 'u8[65536]{0}', space=vmem, size = 0x10000, scoped, tag = 'input window, operand 3, single buffered']
    #allocation6 [shape = 's32[1]{0}', space=sflag, size = 0x4, scoped, tag = 'scoped memory for tpu_custom_call.1']
    #allocation7 [shape = 'u8[131072]{0}', space=vmem, size = 0x20000, scoped, tag = 'output window, operand 0']
    %9 = vsyncpa [#allocation3], 0
    %s10 = scalar_lea.sflag [#allocation3], 1
    %11 = vsyncpa %s10, 0
    %12 = vsyncpa [#allocation6], 0
    %13 = vsyncpa [#allocation4], 0
    %s14 = scalar_lea.sflag [#allocation4], 1
    %15 = vsyncpa %s14, 0
    loop: start=0, step=1, limit=4
    $region2: #{tpu_custom_call.1} parent=1 // loop_pre_header
      _
    $region3: #{tpu_custom_call.1} parent=1 // loop_header
      %s17 = sphi 0, %s21
      %p18 = scmp.ge.s32.totalorder %s17, 4
      %s27 = sphi 0, %s29
      %s30 = sphi 0, %s27
      %s31 = sphi 0, %s30
      %s47 = sphi 0, %s31
      %s51 = sphi 0, %s51
      %s53 = sphi 0, %s51
      %s54 = sphi 0, %s53
      %s68 = sphi 0, %s54
      %s72 = sphi 0, %s72
      %s74 = sphi 0, %s72
      %s75 = sphi 0, %s74
      %s89 = sphi 0, %s75
      %s93 = sphi 0, %s93
      %s95 = sphi 0, %s93
      %s96 = sphi 0, %s95
      %s110 = sphi 0, %s96
      %s116 = sphi 0, %s118
      %s119 = sphi 0, %s116
      %s120 = sphi 0, %s119
      %s136 = sphi 0, %s120
    $region4: #{tpu_custom_call.1} parent=1 // loop_header_branch
      %20 = sbr.rel (%p18) target = $region8
    $region5: #{tpu_custom_call.1} parent=1 // loop_body
      %s22 = ssub.s32 %s17, 1
      %s23 = ssub.s32 %s17, 2
      %s24 = sadd.s32 %s17, 1
      %s25 = ssub.s32 %s17, %s24
      %p26 = scmp.eq.s32.totalorder %s25, 0
      %s28 = sadd.s32 %s27, 1
      %s29 = scalar_select %p26, %s27, %s28
      %p32 = pneg %p26
      %p33 = scmp.eq.s32.totalorder %s17, 1
      %p34 = por %p32, %p33
      %p35 = scmp.ne.s32.totalorder %s27, %s30
      %p36 = scmp.eq.s32.totalorder %s17, 0
      %p37 = por %p35, %p36
      %p38 = scmp.ne.s32.totalorder %s27, %s30
      %p39 = scmp.eq.s32.totalorder %s22, 1
      %p40 = por %p38, %p39
      %p41 = scmp.ne.s32.totalorder %s30, %s31
      %p42 = scmp.eq.s32.totalorder %s22, 0
      %p43 = por %p41, %p42
      %p44 = scmp.ne.s32.totalorder %s30, %s31
      %p45 = scmp.eq.s32.totalorder %s23, 1
      %p46 = por %p44, %p45
      %p48 = scmp.ne.s32.totalorder %s31, %s47
      %p49 = scmp.eq.s32.totalorder %s23, 0
      %p50 = por %p48, %p49
      %s52 = sadd.s32 %s51, 1
      %p55 = scmp.eq.s32.totalorder %s17, 1
      %p56 = scmp.ne.s32.totalorder %s51, %s53
      %p57 = scmp.eq.s32.totalorder %s17, 0
      %p58 = por %p56, %p57
      %p59 = scmp.ne.s32.totalorder %s51, %s53
      %p60 = scmp.eq.s32.totalorder %s22, 1
      %p61 = por %p59, %p60
      %p62 = scmp.ne.s32.totalorder %s53, %s54
      %p63 = scmp.eq.s32.totalorder %s22, 0
      %p64 = por %p62, %p63
      %p65 = scmp.ne.s32.totalorder %s53, %s54
      %p66 = scmp.eq.s32.totalorder %s23, 1
      %p67 = por %p65, %p66
      %p69 = scmp.ne.s32.totalorder %s54, %s68
      %p70 = scmp.eq.s32.totalorder %s23, 0
      %p71 = por %p69, %p70
      %s73 = sadd.s32 %s72, 1
      %p76 = scmp.eq.s32.totalorder %s17, 1
      %p77 = scmp.ne.s32.totalorder %s72, %s74
      %p78 = scmp.eq.s32.totalorder %s17, 0
      %p79 = por %p77, %p78
      %p80 = scmp.ne.s32.totalorder %s72, %s74
      %p81 = scmp.eq.s32.totalorder %s22, 1
      %p82 = por %p80, %p81
      %p83 = scmp.ne.s32.totalorder %s74, %s75
      %p84 = scmp.eq.s32.totalorder %s22, 0
      %p85 = por %p83, %p84
      %p86 = scmp.ne.s32.totalorder %s74, %s75
      %p87 = scmp.eq.s32.totalorder %s23, 1
      %p88 = por %p86, %p87
      %p90 = scmp.ne.s32.totalorder %s75, %s89
      %p91 = scmp.eq.s32.totalorder %s23, 0
      %p92 = por %p90, %p91
      %s94 = sadd.s32 %s93, 1
      %p97 = scmp.eq.s32.totalorder %s17, 1
      %p98 = scmp.ne.s32.totalorder %s93, %s95
      %p99 = scmp.eq.s32.totalorder %s17, 0
      %p100 = por %p98, %p99
      %p101 = scmp.ne.s32.totalorder %s93, %s95
      %p102 = scmp.eq.s32.totalorder %s22, 1
      %p103 = por %p101, %p102
      %p104 = scmp.ne.s32.totalorder %s95, %s96
      %p105 = scmp.eq.s32.totalorder %s22, 0
      %p106 = por %p104, %p105
      %p107 = scmp.ne.s32.totalorder %s95, %s96
      %p108 = scmp.eq.s32.totalorder %s23, 1
      %p109 = por %p107, %p108
      %p111 = scmp.ne.s32.totalorder %s96, %s110
      %p112 = scmp.eq.s32.totalorder %s23, 0
      %p113 = por %p111, %p112
      %s114 = ssub.s32 %s17, %s24
      %p115 = scmp.eq.s32.totalorder %s114, 0
      %s117 = sadd.s32 %s116, 1
      %s118 = scalar_select %p115, %s116, %s117
      %p121 = pneg %p115
      %p122 = scmp.eq.s32.totalorder %s17, 1
      %p123 = por %p121, %p122
      %p124 = scmp.ne.s32.totalorder %s116, %s119
      %p125 = scmp.eq.s32.totalorder %s17, 0
      %p126 = por %p124, %p125
      %p127 = scmp.ne.s32.totalorder %s116, %s119
      %p128 = scmp.eq.s32.totalorder %s22, 1
      %p129 = por %p127, %p128
      %p130 = scmp.ne.s32.totalorder %s119, %s120
      %p131 = scmp.eq.s32.totalorder %s22, 0
      %p132 = por %p130, %p131
      %p133 = scmp.ne.s32.totalorder %s119, %s120
      %p134 = scmp.eq.s32.totalorder %s23, 1
      %p135 = por %p133, %p134
      %p137 = scmp.ne.s32.totalorder %s120, %s136
      %p138 = scmp.eq.s32.totalorder %s23, 0
      %p139 = por %p137, %p138
      %p140 = scmp.le.s32.totalorder 1, %s17
      %p141 = scmp.lt.s32.totalorder %s17, 3
      %p142 = pnand %p140, %p141
      %p143 = pneg %p142
      // Predicated region
      $region9: #{tpu_custom_call.1} parent=5 // pred_check
        _
      $region10: #{tpu_custom_call.1} parent=5 // pred_check_branch
        %145 = sbr.rel (%p142) target = $region12
      $region11: #{tpu_custom_call.1} parent=5 // pred_region
        %s146 = ssub.s32 %s17, 1
        // Predicated region
        $region13: #{tpu_custom_call.1} parent=11 // pred_check
          %p147 = pneg %p64
        $region14: #{tpu_custom_call.1} parent=11 // pred_check_branch
          %149 = sbr.rel (%p147) target = $region16
        $region15: #{tpu_custom_call.1} parent=11 // pred_region
          _
        $region16: #{tpu_custom_call.1} parent=11 // pred_fallthru
          _
        // Predicated region
        $region17: #{tpu_custom_call.1} parent=11 // pred_check
          %p150 = pneg %p85
        $region18: #{tpu_custom_call.1} parent=11 // pred_check_branch
          %152 = sbr.rel (%p150) target = $region20
        $region19: #{tpu_custom_call.1} parent=11 // pred_region
          _
        $region20: #{tpu_custom_call.1} parent=11 // pred_fallthru
          _
        // Predicated region
        $region21: #{tpu_custom_call.1} parent=11 // pred_check
          %p153 = pneg %p106
        $region22: #{tpu_custom_call.1} parent=11 // pred_check_branch
          %155 = sbr.rel (%p153) target = $region24
        $region23: #{tpu_custom_call.1} parent=11 // pred_region
          %s157 = ssub.s32 2048, 2048
          %158 = vsyncadd [#allocation6], %s157
          %s159 = sshll.u32 [#allocation5], 4
          %s160 = int_to_ptr.vmem [resolvable:$true] %s159
          %165 = dma.hbm_to_vmem [thread:$0]  %s3, 2048, %s160, [#allocation6], 128, 128, 8
        $region24: #{tpu_custom_call.1} parent=11 // pred_fallthru
          _
      $region12: #{tpu_custom_call.1} parent=5 // pred_fallthru
        _
      %p166 = scmp.lt.s32.totalorder %s17, 2
      // Predicated region
      $region25: #{tpu_custom_call.1} parent=5 // pred_check
        %p167 = pneg %p166
      $region26: #{tpu_custom_call.1} parent=5 // pred_check_branch
        %169 = sbr.rel (%p167) target = $region28
      $region27: #{tpu_custom_call.1} parent=5 // pred_region
        // Predicated region
        $region29: #{tpu_custom_call.1} parent=27 // pred_check
          %p170 = pneg %p37
        $region30: #{tpu_custom_call.1} parent=27 // pred_check_branch
          %172 = sbr.rel (%p170) target = $region32
        $region31: #{tpu_custom_call.1} parent=27 // pred_region
          %s173 = sand.u32 %s27, 1
          %s174 = scalar_lea.sflag [#allocation3], %s173
          %s175 = sand.u32 %s27, 1
          %s176 = smul.addr %s175, 128
          %s177 = scalar_lea.vmem [#allocation2], %s176
          %s178 = smul.u32 16, %s17
          %s180 = ssub.s32 2048, 2048
          %181 = vsyncadd %s174, %s180
          %s182 = smul.addr %s178, 128
          %s183 = scalar_lea.hbm %s0, %s182
          %s184 = sshll.u32 %s177, 4
          %s185 = int_to_ptr.vmem [resolvable:$true] %s184
          %190 = dma.hbm_to_vmem [thread:$0]  %s183, 2048, %s185, %s174, 128, 128, 8
        $region32: #{tpu_custom_call.1} parent=27 // pred_fallthru
          _
      $region28: #{tpu_custom_call.1} parent=5 // pred_fallthru
        _
      %p191 = scmp.le.s32.totalorder 1, %s17
      %p192 = scmp.lt.s32.totalorder %s17, 3
      %p193 = pnand %p191, %p192
      %p194 = pneg %p193
      // Predicated region
      $region33: #{tpu_custom_call.1} parent=5 // pred_check
        _
      $region34: #{tpu_custom_call.1} parent=5 // pred_check_branch
        %196 = sbr.rel (%p193) target = $region36
      $region35: #{tpu_custom_call.1} parent=5 // pred_region
        %s197 = ssub.s32 %s17, 1
        %s198 = sand.u32 %s30, 1
        %s199 = scalar_lea.sflag [#allocation3], %s198
        %s200 = sand.u32 %s30, 1
        %s201 = smul.addr %s200, 128
        %s202 = scalar_lea.vmem [#allocation2], %s201
        // Predicated region
        $region37: #{tpu_custom_call.1} parent=35 // pred_check
          %p203 = pneg %p43
        $region38: #{tpu_custom_call.1} parent=35 // pred_check_branch
          %205 = sbr.rel (%p203) target = $region40
        $region39: #{tpu_custom_call.1} parent=35 // pred_region
          %206 = dma.done %s199, 2048
        $region40: #{tpu_custom_call.1} parent=35 // pred_fallthru
          _
        // Predicated region
        $region41: #{tpu_custom_call.1} parent=35 // pred_check
          %p207 = pneg %p106
        $region42: #{tpu_custom_call.1} parent=35 // pred_check_branch
          %209 = sbr.rel (%p207) target = $region44
        $region43: #{tpu_custom_call.1} parent=35 // pred_region
          %210 = dma.done [#allocation6], 2048
        $region44: #{tpu_custom_call.1} parent=35 // pred_fallthru
          _
        %s211 = sand.u32 %s30, 1
        %s212 = scalar_lea.sflag [#allocation3], %s211
        %s213 = sand.u32 %s30, 1
        %s214 = smul.addr %s213, 128
        %s215 = scalar_lea.vmem [#allocation2], %s214
        %p216 = pneg %p43
        %p217 = pneg %p40
        %p218 = pneg %p64
        %p219 = pneg %p61
        %p220 = pneg %p85
        %p221 = pneg %p82
        %p222 = pneg %p106
        %p223 = pneg %p103
        %p224 = pneg %p132
        %p225 = pneg %p129
        %s226 = sand.u32 %s119, 1
        %s227 = scalar_lea.sflag [#allocation4], %s226
        %s228 = sand.u32 %s119, 1
        %s229 = smul.addr %s228, 128
        %s230 = scalar_lea.vmem [#allocation7], %s229
        %s231 = smul.u32 16, %s22
        %s232 = smul.u32 16, %s22
        %v233 = vld [vmem:[%s202] sm:$0xff]
        %v234 = vld [vmem:[%s202 + $0x8] sm:$0xff]
        %v235 = vld [vmem:[%s202 + $0x10] sm:$0xff]
        %v236 = vld [vmem:[%s202 + $0x18] sm:$0xff]
        %v237 = vld [vmem:[%s202 + $0x20] sm:$0xff]
        %v238 = vld [vmem:[%s202 + $0x28] sm:$0xff]
        %v239 = vld [vmem:[%s202 + $0x30] sm:$0xff]
        %v240 = vld [vmem:[%s202 + $0x38] sm:$0xff]
        %v241 = vld [vmem:[%s202 + $0x40] sm:$0xff]
        %v242 = vld [vmem:[%s202 + $0x48] sm:$0xff]
        %v243 = vld [vmem:[%s202 + $0x50] sm:$0xff]
        %v244 = vld [vmem:[%s202 + $0x58] sm:$0xff]
        %v245 = vld [vmem:[%s202 + $0x60] sm:$0xff]
        %v246 = vld [vmem:[%s202 + $0x68] sm:$0xff]
        %v247 = vld [vmem:[%s202 + $0x70] sm:$0xff]
        %v248 = vld [vmem:[%s202 + $0x78] sm:$0xff]
        %v249 = vld [vmem:[#allocation5] sm:$0xff]
        %v250 = vld [vmem:[#allocation5 + $0x8] sm:$0xff]
        %v251 = vld [vmem:[#allocation5 + $0x10] sm:$0xff]
        %v252 = vld [vmem:[#allocation5 + $0x18] sm:$0xff]
        %v253 = vld [vmem:[#allocation5 + $0x20] sm:$0xff]
        %v254 = vld [vmem:[#allocation5 + $0x28] sm:$0xff]
        %v255 = vld [vmem:[#allocation5 + $0x30] sm:$0xff]
        %v256 = vld [vmem:[#allocation5 + $0x38] sm:$0xff]
        %v257 = vld [vmem:[#allocation5 + $0x40] sm:$0xff]
        %v258 = vld [vmem:[#allocation5 + $0x48] sm:$0xff]
        %v259 = vld [vmem:[#allocation5 + $0x50] sm:$0xff]
        %v260 = vld [vmem:[#allocation5 + $0x58] sm:$0xff]
        %v261 = vld [vmem:[#allocation5 + $0x60] sm:$0xff]
        %v262 = vld [vmem:[#allocation5 + $0x68] sm:$0xff]
        %v263 = vld [vmem:[#allocation5 + $0x70] sm:$0xff]
        %v264 = vld [vmem:[#allocation5 + $0x78] sm:$0xff]
        %265 = vmatprep.subr.mxu0 0.0
        %v266 = vand.u32 %v249, 4294901760
        %267 = vmatpush1.msra.mxu0 %v266
        %268 = vmatprep.subr.mxu0 0.0
        %v269 = vand.u32 %v250, 4294901760
        %270 = vmatpush1.msra.mxu0 %v269
        %271 = vmatprep.subr.mxu0 0.0
        %v272 = vand.u32 %v251, 4294901760
        %273 = vmatpush1.msra.mxu0 %v272
        %274 = vmatprep.subr.mxu0 0.0
        %v275 = vand.u32 %v252, 4294901760
        %276 = vmatpush1.msra.mxu0 %v275
        %277 = vmatprep.subr.mxu0 0.0
        %v278 = vand.u32 %v253, 4294901760
        %279 = vmatpush1.msra.mxu0 %v278
        %280 = vmatprep.subr.mxu0 0.0
        %v281 = vand.u32 %v254, 4294901760
        %282 = vmatpush1.msra.mxu0 %v281
        %283 = vmatprep.subr.mxu0 0.0
        %v284 = vand.u32 %v255, 4294901760
        %285 = vmatpush1.msra.mxu0 %v284
        %286 = vmatprep.subr.mxu0 0.0
        %v287 = vand.u32 %v256, 4294901760
        %288 = vmatpush1.msra.mxu0 %v287
        %289 = vmatprep.subr.mxu0 0.0
        %v290 = vand.u32 %v257, 4294901760
        %291 = vmatpush1.msra.mxu0 %v290
        %292 = vmatprep.subr.mxu0 0.0
        %v293 = vand.u32 %v258, 4294901760
        %294 = vmatpush1.msra.mxu0 %v293
        %295 = vmatprep.subr.mxu0 0.0
        %v296 = vand.u32 %v259, 4294901760
        %297 = vmatpush1.msra.mxu0 %v296
        %298 = vmatprep.subr.mxu0 0.0
        %v299 = vand.u32 %v260, 4294901760
        %300 = vmatpush1.msra.mxu0 %v299
        %301 = vmatprep.subr.mxu0 0.0
        %v302 = vand.u32 %v261, 4294901760
        %303 = vmatpush1.msra.mxu0 %v302
        %304 = vmatprep.subr.mxu0 0.0
        %v305 = vand.u32 %v262, 4294901760
        %306 = vmatpush1.msra.mxu0 %v305
        %307 = vmatprep.subr.mxu0 0.0
        %v308 = vand.u32 %v263, 4294901760
        %309 = vmatpush1.msra.mxu0 %v308
        %310 = vmatprep.subr.mxu0 0.0
        %v311 = vand.u32 %v264, 4294901760
        %312 = vmatpush1.msra.mxu0 %v311
        %313 = vmatprep.subr.mxu0 0.0
        %314 = vmatpush1.msra.mxu0 0.0
        %315 = vmatprep.subr.mxu0 0.0
        %316 = vmatpush1.msra.mxu0 0.0
        %317 = vmatprep.subr.mxu0 0.0
        %318 = vmatpush1.msra.mxu0 0.0
        %319 = vmatprep.subr.mxu0 0.0
        %320 = vmatpush1.msra.mxu0 0.0
        %321 = vmatprep.subr.mxu0 0.0
        %322 = vmatpush1.msra.mxu0 0.0
        %323 = vmatprep.subr.mxu0 0.0
        %324 = vmatpush1.msra.mxu0 0.0
        %325 = vmatprep.subr.mxu0 0.0
        %326 = vmatpush1.msra.mxu0 0.0
        %327 = vmatprep.subr.mxu0 0.0
        %328 = vmatpush1.msra.mxu0 0.0
        %329 = vmatprep.subr.mxu0 0.0
        %330 = vmatpush1.msra.mxu0 0.0
        %331 = vmatprep.subr.mxu0 0.0
        %332 = vmatpush1.msra.mxu0 0.0
        %333 = vmatprep.subr.mxu0 0.0
        %334 = vmatpush1.msra.mxu0 0.0
        %335 = vmatprep.subr.mxu0 0.0
        %336 = vmatpush1.msra.mxu0 0.0
        %337 = vmatprep.subr.mxu0 0.0
        %338 = vmatpush1.msra.mxu0 0.0
        %339 = vmatprep.subr.mxu0 0.0
        %340 = vmatpush1.msra.mxu0 0.0
        %341 = vmatprep.subr.mxu0 0.0
        %342 = vmatpush1.msra.mxu0 0.0
        %343 = vmatprep.subr.mxu0 0.0
        %344 = vmatpush1.msra.mxu0 0.0
        %345 = vmatprep.mubr.f32.mxu0 0.0
        %v346 = vand.u32 %v233, 4294901760
        %v347 = vsub.f32 %v233, %v346
        %v348 = vand.u32 %v347, 4294901760
        %v349 = vsub.f32 %v347, %v348
        %v350 = vand.u32 %v349, 4294901760
        %351 = vmatmul.mubr.f32.gmra.mrb[0].mxu0 %v350
        %v352 = vpop.f32.mrb[0].mxu0
        %v353 = vadd.f32 0.0, %v352
        %v354 = vpop.f32.mrb[0].mxu0
        %355 = vmatprep.mubr.f32.mxu0 0.0
        %v356 = vand.u32 %v234, 4294901760
        %v357 = vsub.f32 %v234, %v356
        %v358 = vand.u32 %v357, 4294901760
        %v359 = vsub.f32 %v357, %v358
        %v360 = vand.u32 %v359, 4294901760
        %361 = vmatmul.mubr.f32.gmra.mrb[0].mxu0 %v360
        %v362 = vpop.f32.mrb[0].mxu0
        %v363 = vadd.f32 0.0, %v362
        %v364 = vpop.f32.mrb[0].mxu0
        %365 = vmatprep.mubr.f32.mxu0 0.0
        %v366 = vand.u32 %v235, 4294901760
        %v367 = vsub.f32 %v235, %v366
        %v368 = vand.u32 %v367, 4294901760
        %v369 = vsub.f32 %v367, %v368
        %v370 = vand.u32 %v369, 4294901760
        %371 = vmatmul.mubr.f32.gmra.mrb[0].mxu0 %v370
        %v372 = vpop.f32.mrb[0].mxu0
        %v373 = vadd.f32 0.0, %v372
        %v374 = vpop.f32.mrb[0].mxu0
        %375 = vmatprep.mubr.f32.mxu0 0.0
        %v376 = vand.u32 %v236, 4294901760
        %v377 = vsub.f32 %v236, %v376
        %v378 = vand.u32 %v377, 4294901760
        %v379 = vsub.f32 %v377, %v378
        %v380 = vand.u32 %v379, 4294901760
        %381 = vmatmul.mubr.f32.gmra.mrb[0].mxu0 %v380
        %v382 = vpop.f32.mrb[0].mxu0
        %v383 = vadd.f32 0.0, %v382
        %v384 = vpop.f32.mrb[0].mxu0
        %385 = vmatprep.mubr.f32.mxu0 0.0
        %v386 = vand.u32 %v237, 4294901760
        %v387 = vsub.f32 %v237, %v386
        %v388 = vand.u32 %v387, 4294901760
        %v389 = vsub.f32 %v387, %v388
        %v390 = vand.u32 %v389, 4294901760
        %391 = vmatmul.mubr.f32.gmra.mrb[0].mxu0 %v390
        %v392 = vpop.f32.mrb[0].mxu0
        %v393 = vadd.f32 0.0, %v392
        %v394 = vpop.f32.mrb[0].mxu0
        %395 = vmatprep.mubr.f32.mxu0 0.0
        %v396 = vand.u32 %v238, 4294901760
        %v397 = vsub.f32 %v238, %v396
        %v398 = vand.u32 %v397, 4294901760
        %v399 = vsub.f32 %v397, %v398
        %v400 = vand.u32 %v399, 4294901760
        %401 = vmatmul.mubr.f32.gmra.mrb[0].mxu0 %v400
        %v402 = vpop.f32.mrb[0].mxu0
        %v403 = vadd.f32 0.0, %v402
        %v404 = vpop.f32.mrb[0].mxu0
        %405 = vmatprep.mubr.f32.mxu0 0.0
        %v406 = vand.u32 %v239, 4294901760
        %v407 = vsub.f32 %v239, %v406
        %v408 = vand.u32 %v407, 4294901760
        %v409 = vsub.f32 %v407, %v408
        %v410 = vand.u32 %v409, 4294901760
        %411 = vmatmul.mubr.f32.gmra.mrb[0].mxu0 %v410
        %v412 = vpop.f32.mrb[0].mxu0
        %v413 = vadd.f32 0.0, %v412
        %v414 = vpop.f32.mrb[0].mxu0
        %415 = vmatprep.mubr.f32.mxu0 0.0
        %v416 = vand.u32 %v240, 4294901760
        %v417 = vsub.f32 %v240, %v416
        %v418 = vand.u32 %v417, 4294901760
        %v419 = vsub.f32 %v417, %v418
        %v420 = vand.u32 %v419, 4294901760
        %421 = vmatmul.mubr.f32.gmra.mrb[0].mxu0 %v420
        %v422 = vpop.f32.mrb[0].mxu0
        %v423 = vadd.f32 0.0, %v422
        %v424 = vpop.f32.mrb[0].mxu0
        %425 = vmatprep.mubr.f32.mxu0 0.0
        %v426 = vand.u32 %v241, 4294901760
        %v427 = vsub.f32 %v241, %v426
        %v428 = vand.u32 %v427, 4294901760
        %v429 = vsub.f32 %v427, %v428
        %v430 = vand.u32 %v429, 4294901760
        %431 = vmatmul.mubr.f32.gmra.mrb[0].mxu0 %v430
        %v432 = vpop.f32.mrb[0].mxu0
        %v433 = vadd.f32 0.0, %v432
        %v434 = vpop.f32.mrb[0].mxu0
        %435 = vmatprep.mubr.f32.mxu0 0.0
        %v436 = vand.u32 %v242, 4294901760
        %v437 = vsub.f32 %v242, %v436
        %v438 = vand.u32 %v437, 4294901760
        %v439 = vsub.f32 %v437, %v438
        %v440 = vand.u32 %v439, 4294901760
        %441 = vmatmul.mubr.f32.gmra.mrb[0].mxu0 %v440
        %v442 = vpop.f32.mrb[0].mxu0
        %v443 = vadd.f32 0.0, %v442
        %v444 = vpop.f32.mrb[0].mxu0
        %445 = vmatprep.mubr.f32.mxu0 0.0
        %v446 = vand.u32 %v243, 4294901760
        %v447 = vsub.f32 %v243, %v446
        %v448 = vand.u32 %v447, 4294901760
        %v449 = vsub.f32 %v447, %v448
        %v450 = vand.u32 %v449, 4294901760
        %451 = vmatmul.mubr.f32.gmra.mrb[0].mxu0 %v450
        %v452 = vpop.f32.mrb[0].mxu0
        %v453 = vadd.f32 0.0, %v452
        %v454 = vpop.f32.mrb[0].mxu0
        %455 = vmatprep.mubr.f32.mxu0 0.0
        %v456 = vand.u32 %v244, 4294901760
        %v457 = vsub.f32 %v244, %v456
        %v458 = vand.u32 %v457, 4294901760
        %v459 = vsub.f32 %v457, %v458
        %v460 = vand.u32 %v459, 4294901760
        %461 = vmatmul.mubr.f32.gmra.mrb[0].mxu0 %v460
        %v462 = vpop.f32.mrb[0].mxu0
        %v463 = vadd.f32 0.0, %v462
        %v464 = vpop.f32.mrb[0].mxu0
        %465 = vmatprep.mubr.f32.mxu0 0.0
        %v466 = vand.u32 %v245, 4294901760
        %v467 = vsub.f32 %v245, %v466
        %v468 = vand.u32 %v467, 4294901760
        %v469 = vsub.f32 %v467, %v468
        %v470 = vand.u32 %v469, 4294901760
        %471 = vmatmul.mubr.f32.gmra.mrb[0].mxu0 %v470
        %v472 = vpop.f32.mrb[0].mxu0
        %v473 = vadd.f32 0.0, %v472
        %v474 = vpop.f32.mrb[0].mxu0
        %475 = vmatprep.mubr.f32.mxu0 0.0
        %v476 = vand.u32 %v246, 4294901760
        %v477 = vsub.f32 %v246, %v476
        %v478 = vand.u32 %v477, 4294901760
        %v479 = vsub.f32 %v477, %v478
        %v480 = vand.u32 %v479, 4294901760
        %481 = vmatmul.mubr.f32.gmra.mrb[0].mxu0 %v480
        %v482 = vpop.f32.mrb[0].mxu0
        %v483 = vadd.f32 0.0, %v482
        %v484 = vpop.f32.mrb[0].mxu0
        %485 = vmatprep.mubr.f32.mxu0 0.0
        %v486 = vand.u32 %v247, 4294901760
        %v487 = vsub.f32 %v247, %v486
        %v488 = vand.u32 %v487, 4294901760
        %v489 = vsub.f32 %v487, %v488
        %v490 = vand.u32 %v489, 4294901760
        %491 = vmatmul.mubr.f32.gmra.mrb[0].mxu0 %v490
        %v492 = vpop.f32.mrb[0].mxu0
        %v493 = vadd.f32 0.0, %v492
        %v494 = vpop.f32.mrb[0].mxu0
        %495 = vmatprep.mubr.f32.mxu0 0.0
        %v496 = vand.u32 %v248, 4294901760
        %v497 = vsub.f32 %v248, %v496
        %v498 = vand.u32 %v497, 4294901760
        %v499 = vsub.f32 %v497, %v498
        %v500 = vand.u32 %v499, 4294901760
        %501 = vmatmul.mubr.f32.gmra.mrb[0].mxu0 %v500
        %v502 = vpop.f32.mrb[0].mxu0
        %v503 = vadd.f32 0.0, %v502
        %v504 = vpop.f32.mrb[0].mxu0
        %505 = vdwg.mxu0
        %506 = vmatprep.subr.mxu0 0.0
        %v507 = vand.u32 %v249, 4294901760
        %v508 = vsub.f32 %v249, %v507
        %v509 = vand.u32 %v508, 4294901760
        %v510 = vsub.f32 %v508, %v509
        %v511 = vand.u32 %v510, 4294901760
        %512 = vmatpush1.msra.mxu0 %v511
        %513 = vmatprep.subr.mxu0 0.0
        %v514 = vand.u32 %v250, 4294901760
        %v515 = vsub.f32 %v250, %v514
        %v516 = vand.u32 %v515, 4294901760
        %v517 = vsub.f32 %v515, %v516
        %v518 = vand.u32 %v517, 4294901760
        %519 = vmatpush1.msra.mxu0 %v518
        %520 = vmatprep.subr.mxu0 0.0
        %v521 = vand.u32 %v251, 4294901760
        %v522 = vsub.f32 %v251, %v521
        %v523 = vand.u32 %v522, 4294901760
        %v524 = vsub.f32 %v522, %v523
        %v525 = vand.u32 %v524, 4294901760
        %526 = vmatpush1.msra.mxu0 %v525
        %527 = vmatprep.subr.mxu0 0.0
        %v528 = vand.u32 %v252, 4294901760
        %v529 = vsub.f32 %v252, %v528
        %v530 = vand.u32 %v529, 4294901760
        %v531 = vsub.f32 %v529, %v530
        %v532 = vand.u32 %v531, 4294901760
        %533 = vmatpush1.msra.mxu0 %v532
        %534 = vmatprep.subr.mxu0 0.0
        %v535 = vand.u32 %v253, 4294901760
        %v536 = vsub.f32 %v253, %v535
        %v537 = vand.u32 %v536, 4294901760
        %v538 = vsub.f32 %v536, %v537
        %v539 = vand.u32 %v538, 4294901760
        %540 = vmatpush1.msra.mxu0 %v539
        %541 = vmatprep.subr.mxu0 0.0
        %v542 = vand.u32 %v254, 4294901760
        %v543 = vsub.f32 %v254, %v542
        %v544 = vand.u32 %v543, 4294901760
        %v545 = vsub.f32 %v543, %v544
        %v546 = vand.u32 %v545, 4294901760
        %547 = vmatpush1.msra.mxu0 %v546
        %548 = vmatprep.subr.mxu0 0.0
        %v549 = vand.u32 %v255, 4294901760
        %v550 = vsub.f32 %v255, %v549
        %v551 = vand.u32 %v550, 4294901760
        %v552 = vsub.f32 %v550, %v551
        %v553 = vand.u32 %v552, 4294901760
        %554 = vmatpush1.msra.mxu0 %v553
        %555 = vmatprep.subr.mxu0 0.0
        %v556 = vand.u32 %v256, 4294901760
        %v557 = vsub.f32 %v256, %v556
        %v558 = vand.u32 %v557, 4294901760
        %v559 = vsub.f32 %v557, %v558
        %v560 = vand.u32 %v559, 4294901760
        %561 = vmatpush1.msra.mxu0 %v560
        %562 = vmatprep.subr.mxu0 0.0
        %v563 = vand.u32 %v257, 4294901760
        %v564 = vsub.f32 %v257, %v563
        %v565 = vand.u32 %v564, 4294901760
        %v566 = vsub.f32 %v564, %v565
        %v567 = vand.u32 %v566, 4294901760
        %568 = vmatpush1.msra.mxu0 %v567
        %569 = vmatprep.subr.mxu0 0.0
        %v570 = vand.u32 %v258, 4294901760
        %v571 = vsub.f32 %v258, %v570
        %v572 = vand.u32 %v571, 4294901760
        %v573 = vsub.f32 %v571, %v572
        %v574 = vand.u32 %v573, 4294901760
        %575 = vmatpush1.msra.mxu0 %v574
        %576 = vmatprep.subr.mxu0 0.0
        %v577 = vand.u32 %v259, 4294901760
        %v578 = vsub.f32 %v259, %v577
        %v579 = vand.u32 %v578, 4294901760
        %v580 = vsub.f32 %v578, %v579
        %v581 = vand.u32 %v580, 4294901760
        %582 = vmatpush1.msra.mxu0 %v581
        %583 = vmatprep.subr.mxu0 0.0
        %v584 = vand.u32 %v260, 4294901760
        %v585 = vsub.f32 %v260, %v584
        %v586 = vand.u32 %v585, 4294901760
        %v587 = vsub.f32 %v585, %v586
        %v588 = vand.u32 %v587, 4294901760
        %589 = vmatpush1.msra.mxu0 %v588
        %590 = vmatprep.subr.mxu0 0.0
        %v591 = vand.u32 %v261, 4294901760
        %v592 = vsub.f32 %v261, %v591
        %v593 = vand.u32 %v592, 4294901760
        %v594 = vsub.f32 %v592, %v593
        %v595 = vand.u32 %v594, 4294901760
        %596 = vmatpush1.msra.mxu0 %v595
        %597 = vmatprep.subr.mxu0 0.0
        %v598 = vand.u32 %v262, 4294901760
        %v599 = vsub.f32 %v262, %v598
        %v600 = vand.u32 %v599, 4294901760
        %v601 = vsub.f32 %v599, %v600
        %v602 = vand.u32 %v601, 4294901760
        %603 = vmatpush1.msra.mxu0 %v602
        %604 = vmatprep.subr.mxu0 0.0
        %v605 = vand.u32 %v263, 4294901760
        %v606 = vsub.f32 %v263, %v605
        %v607 = vand.u32 %v606, 4294901760
        %v608 = vsub.f32 %v606, %v607
        %v609 = vand.u32 %v608, 4294901760
        %610 = vmatpush1.msra.mxu0 %v609
        %611 = vmatprep.subr.mxu0 0.0
        %v612 = vand.u32 %v264, 4294901760
        %v613 = vsub.f32 %v264, %v612
        %v614 = vand.u32 %v613, 4294901760
        %v615 = vsub.f32 %v613, %v614
        %v616 = vand.u32 %v615, 4294901760
        %617 = vmatpush1.msra.mxu0 %v616
        %618 = vmatprep.subr.mxu0 0.0
        %619 = vmatpush1.msra.mxu0 0.0
        %620 = vmatprep.subr.mxu0 0.0
        %621 = vmatpush1.msra.mxu0 0.0
        %622 = vmatprep.subr.mxu0 0.0
        %623 = vmatpush1.msra.mxu0 0.0
        %624 = vmatprep.subr.mxu0 0.0
        %625 = vmatpush1.msra.mxu0 0.0
        %626 = vmatprep.subr.mxu0 0.0
        %627 = vmatpush1.msra.mxu0 0.0
        %628 = vmatprep.subr.mxu0 0.0
        %629 = vmatpush1.msra.mxu0 0.0
        %630 = vmatprep.subr.mxu0 0.0
        %631 = vmatpush1.msra.mxu0 0.0
        %632 = vmatprep.subr.mxu0 0.0
        %633 = vmatpush1.msra.mxu0 0.0
        %634 = vmatprep.subr.mxu0 0.0
        %635 = vmatpush1.msra.mxu0 0.0
        %636 = vmatprep.subr.mxu0 0.0
        %637 = vmatpush1.msra.mxu0 0.0
        %638 = vmatprep.subr.mxu0 0.0
        %639 = vmatpush1.msra.mxu0 0.0
        %640 = vmatprep.subr.mxu0 0.0
        %641 = vmatpush1.msra.mxu0 0.0
        %642 = vmatprep.subr.mxu0 0.0
        %643 = vmatpush1.msra.mxu0 0.0
        %644 = vmatprep.subr.mxu0 0.0
        %645 = vmatpush1.msra.mxu0 0.0
        %646 = vmatprep.subr.mxu0 0.0
        %647 = vmatpush1.msra.mxu0 0.0
        %648 = vmatprep.subr.mxu0 0.0
        %649 = vmatpush1.msra.mxu0 0.0
        %650 = vmatprep.mubr.f32.mxu0 0.0
        %v651 = vand.u32 %v233, 4294901760
        %652 = vmatmul.mubr.f32.gmra.mrb[0].mxu0 %v651
        %v653 = vpop.f32.mrb[0].mxu0
        %v654 = vadd.f32 %v353, %v653
        %v655 = vpop.f32.mrb[0].mxu0
        %656 = vmatprep.mubr.f32.mxu0 0.0
        %v657 = vand.u32 %v234, 4294901760
        %658 = vmatmul.mubr.f32.gmra.mrb[0].mxu0 %v657
        %v659 = vpop.f32.mrb[0].mxu0
        %v660 = vadd.f32 %v363, %v659
        %v661 = vpop.f32.mrb[0].mxu0
        %662 = vmatprep.mubr.f32.mxu0 0.0
        %v663 = vand.u32 %v235, 4294901760
        %664 = vmatmul.mubr.f32.gmra.mrb[0].mxu0 %v663
        %v665 = vpop.f32.mrb[0].mxu0
        %v666 = vadd.f32 %v373, %v665
        %v667 = vpop.f32.mrb[0].mxu0
        %668 = vmatprep.mubr.f32.mxu0 0.0
        %v669 = vand.u32 %v236, 4294901760
        %670 = vmatmul.mubr.f32.gmra.mrb[0].mxu0 %v669
        %v671 = vpop.f32.mrb[0].mxu0
        %v672 = vadd.f32 %v383, %v671
        %v673 = vpop.f32.mrb[0].mxu0
        %674 = vmatprep.mubr.f32.mxu0 0.0
        %v675 = vand.u32 %v237, 4294901760
        %676 = vmatmul.mubr.f32.gmra.mrb[0].mxu0 %v675
        %v677 = vpop.f32.mrb[0].mxu0
        %v678 = vadd.f32 %v393, %v677
        %v679 = vpop.f32.mrb[0].mxu0
        %680 = vmatprep.mubr.f32.mxu0 0.0
        %v681 = vand.u32 %v238, 4294901760
        %682 = vmatmul.mubr.f32.gmra.mrb[0].mxu0 %v681
        %v683 = vpop.f32.mrb[0].mxu0
        %v684 = vadd.f32 %v403, %v683
        %v685 = vpop.f32.mrb[0].mxu0
        %686 = vmatprep.mubr.f32.mxu0 0.0
        %v687 = vand.u32 %v239, 4294901760
        %688 = vmatmul.mubr.f32.gmra.mrb[0].mxu0 %v687
        %v689 = vpop.f32.mrb[0].mxu0
        %v690 = vadd.f32 %v413, %v689
        %v691 = vpop.f32.mrb[0].mxu0
        %692 = vmatprep.mubr.f32.mxu0 0.0
        %v693 = vand.u32 %v240, 4294901760
        %694 = vmatmul.mubr.f32.gmra.mrb[0].mxu0 %v693
        %v695 = vpop.f32.mrb[0].mxu0
        %v696 = vadd.f32 %v423, %v695
        %v697 = vpop.f32.mrb[0].mxu0
        %698 = vmatprep.mubr.f32.mxu0 0.0
        %v699 = vand.u32 %v241, 4294901760
        %700 = vmatmul.mubr.f32.gmra.mrb[0].mxu0 %v699
        %v701 = vpop.f32.mrb[0].mxu0
        %v702 = vadd.f32 %v433, %v701
        %v703 = vpop.f32.mrb[0].mxu0
        %704 = vmatprep.mubr.f32.mxu0 0.0
        %v705 = vand.u32 %v242, 4294901760
        %706 = vmatmul.mubr.f32.gmra.mrb[0].mxu0 %v705
        %v707 = vpop.f32.mrb[0].mxu0
        %v708 = vadd.f32 %v443, %v707
        %v709 = vpop.f32.mrb[0].mxu0
        %710 = vmatprep.mubr.f32.mxu0 0.0
        %v711 = vand.u32 %v243, 4294901760
        %712 = vmatmul.mubr.f32.gmra.mrb[0].mxu0 %v711
        %v713 = vpop.f32.mrb[0].mxu0
        %v714 = vadd.f32 %v453, %v713
        %v715 = vpop.f32.mrb[0].mxu0
        %716 = vmatprep.mubr.f32.mxu0 0.0
        %v717 = vand.u32 %v244, 4294901760
        %718 = vmatmul.mubr.f32.gmra.mrb[0].mxu0 %v717
        %v719 = vpop.f32.mrb[0].mxu0
        %v720 = vadd.f32 %v463, %v719
        %v721 = vpop.f32.mrb[0].mxu0
        %722 = vmatprep.mubr.f32.mxu0 0.0
        %v723 = vand.u32 %v245, 4294901760
        %724 = vmatmul.mubr.f32.gmra.mrb[0].mxu0 %v723
        %v725 = vpop.f32.mrb[0].mxu0
        %v726 = vadd.f32 %v473, %v725
        %v727 = vpop.f32.mrb[0].mxu0
        %728 = vmatprep.mubr.f32.mxu0 0.0
        %v729 = vand.u32 %v246, 4294901760
        %730 = vmatmul.mubr.f32.gmra.mrb[0].mxu0 %v729
        %v731 = vpop.f32.mrb[0].mxu0
        %v732 = vadd.f32 %v483, %v731
        %v733 = vpop.f32.mrb[0].mxu0
        %734 = vmatprep.mubr.f32.mxu0 0.0
        %v735 = vand.u32 %v247, 4294901760
        %736 = vmatmul.mubr.f32.gmra.mrb[0].mxu0 %v735
        %v737 = vpop.f32.mrb[0].mxu0
        %v738 = vadd.f32 %v493, %v737
        %v739 = vpop.f32.mrb[0].mxu0
        %740 = vmatprep.mubr.f32.mxu0 0.0
        %v741 = vand.u32 %v248, 4294901760
        %742 = vmatmul.mubr.f32.gmra.mrb[0].mxu0 %v741
        %v743 = vpop.f32.mrb[0].mxu0
        %v744 = vadd.f32 %v503, %v743
        %v745 = vpop.f32.mrb[0].mxu0
        %746 = vdwg.mxu0
        %747 = vmatprep.subr.mxu0 0.0
        %v748 = vand.u32 %v249, 4294901760
        %v749 = vsub.f32 %v249, %v748
        %750 = vmatpush1.msra.mxu0 %v749
        %751 = vmatprep.subr.mxu0 0.0
        %v752 = vand.u32 %v250, 4294901760
        %v753 = vsub.f32 %v250, %v752
        %754 = vmatpush1.msra.mxu0 %v753
        %755 = vmatprep.subr.mxu0 0.0
        %v756 = vand.u32 %v251, 4294901760
        %v757 = vsub.f32 %v251, %v756
        %758 = vmatpush1.msra.mxu0 %v757
        %759 = vmatprep.subr.mxu0 0.0
        %v760 = vand.u32 %v252, 4294901760
        %v761 = vsub.f32 %v252, %v760
        %762 = vmatpush1.msra.mxu0 %v761
        %763 = vmatprep.subr.mxu0 0.0
        %v764 = vand.u32 %v253, 4294901760
        %v765 = vsub.f32 %v253, %v764
        %766 = vmatpush1.msra.mxu0 %v765
        %767 = vmatprep.subr.mxu0 0.0
        %v768 = vand.u32 %v254, 4294901760
        %v769 = vsub.f32 %v254, %v768
        %770 = vmatpush1.msra.mxu0 %v769
        %771 = vmatprep.subr.mxu0 0.0
        %v772 = vand.u32 %v255, 4294901760
        %v773 = vsub.f32 %v255, %v772
        %774 = vmatpush1.msra.mxu0 %v773
        %775 = vmatprep.subr.mxu0 0.0
        %v776 = vand.u32 %v256, 4294901760
        %v777 = vsub.f32 %v256, %v776
        %778 = vmatpush1.msra.mxu0 %v777
        %779 = vmatprep.subr.mxu0 0.0
        %v780 = vand.u32 %v257, 4294901760
        %v781 = vsub.f32 %v257, %v780
        %782 = vmatpush1.msra.mxu0 %v781
        %783 = vmatprep.subr.mxu0 0.0
        %v784 = vand.u32 %v258, 4294901760
        %v785 = vsub.f32 %v258, %v784
        %786 = vmatpush1.msra.mxu0 %v785
        %787 = vmatprep.subr.mxu0 0.0
        %v788 = vand.u32 %v259, 4294901760
        %v789 = vsub.f32 %v259, %v788
        %790 = vmatpush1.msra.mxu0 %v789
        %791 = vmatprep.subr.mxu0 0.0
        %v792 = vand.u32 %v260, 4294901760
        %v793 = vsub.f32 %v260, %v792
        %794 = vmatpush1.msra.mxu0 %v793
        %795 = vmatprep.subr.mxu0 0.0
        %v796 = vand.u32 %v261, 4294901760
        %v797 = vsub.f32 %v261, %v796
        %798 = vmatpush1.msra.mxu0 %v797
        %799 = vmatprep.subr.mxu0 0.0
        %v800 = vand.u32 %v262, 4294901760
        %v801 = vsub.f32 %v262, %v800
        %802 = vmatpush1.msra.mxu0 %v801
        %803 = vmatprep.subr.mxu0 0.0
        %v804 = vand.u32 %v263, 4294901760
        %v805 = vsub.f32 %v263, %v804
        %806 = vmatpush1.msra.mxu0 %v805
        %807 = vmatprep.subr.mxu0 0.0
        %v808 = vand.u32 %v264, 4294901760
        %v809 = vsub.f32 %v264, %v808
        %810 = vmatpush1.msra.mxu0 %v809
        %811 = vmatprep.subr.mxu0 0.0
        %812 = vmatpush1.msra.mxu0 0.0
        %813 = vmatprep.subr.mxu0 0.0
        %814 = vmatpush1.msra.mxu0 0.0
        %815 = vmatprep.subr.mxu0 0.0
        %816 = vmatpush1.msra.mxu0 0.0
        %817 = vmatprep.subr.mxu0 0.0
        %818 = vmatpush1.msra.mxu0 0.0
        %819 = vmatprep.subr.mxu0 0.0
        %820 = vmatpush1.msra.mxu0 0.0
        %821 = vmatprep.subr.mxu0 0.0
        %822 = vmatpush1.msra.mxu0 0.0
        %823 = vmatprep.subr.mxu0 0.0
        %824 = vmatpush1.msra.mxu0 0.0
        %825 = vmatprep.subr.mxu0 0.0
        %826 = vmatpush1.msra.mxu0 0.0
        %827 = vmatprep.subr.mxu0 0.0
        %828 = vmatpush1.msra.mxu0 0.0
        %829 = vmatprep.subr.mxu0 0.0
        %830 = vmatpush1.msra.mxu0 0.0
        %831 = vmatprep.subr.mxu0 0.0
        %832 = vmatpush1.msra.mxu0 0.0
        %833 = vmatprep.subr.mxu0 0.0
        %834 = vmatpush1.msra.mxu0 0.0
        %835 = vmatprep.subr.mxu0 0.0
        %836 = vmatpush1.msra.mxu0 0.0
        %837 = vmatprep.subr.mxu0 0.0
        %838 = vmatpush1.msra.mxu0 0.0
        %839 = vmatprep.subr.mxu0 0.0
        %840 = vmatpush1.msra.mxu0 0.0
        %841 = vmatprep.subr.mxu0 0.0
        %842 = vmatpush1.msra.mxu0 0.0
        %843 = vmatprep.mubr.f32.mxu0 0.0
        %v844 = vand.u32 %v233, 4294901760
        %v845 = vsub.f32 %v233, %v844
        %846 = vmatmul.mubr.f32.gmra.mrb[0].mxu0 %v845
        %v847 = vpop.f32.mrb[0].mxu0
        %v848 = vadd.f32 %v654, %v847
        %v849 = vpop.f32.mrb[0].mxu0
        %850 = vmatprep.mubr.f32.mxu0 0.0
        %v851 = vand.u32 %v234, 4294901760
        %v852 = vsub.f32 %v234, %v851
        %853 = vmatmul.mubr.f32.gmra.mrb[0].mxu0 %v852
        %v854 = vpop.f32.mrb[0].mxu0
        %v855 = vadd.f32 %v660, %v854
        %v856 = vpop.f32.mrb[0].mxu0
        %857 = vmatprep.mubr.f32.mxu0 0.0
        %v858 = vand.u32 %v235, 4294901760
        %v859 = vsub.f32 %v235, %v858
        %860 = vmatmul.mubr.f32.gmra.mrb[0].mxu0 %v859
        %v861 = vpop.f32.mrb[0].mxu0
        %v862 = vadd.f32 %v666, %v861
        %v863 = vpop.f32.mrb[0].mxu0
        %864 = vmatprep.mubr.f32.mxu0 0.0
        %v865 = vand.u32 %v236, 4294901760
        %v866 = vsub.f32 %v236, %v865
        %867 = vmatmul.mubr.f32.gmra.mrb[0].mxu0 %v866
        %v868 = vpop.f32.mrb[0].mxu0
        %v869 = vadd.f32 %v672, %v868
        %v870 = vpop.f32.mrb[0].mxu0
        %871 = vmatprep.mubr.f32.mxu0 0.0
        %v872 = vand.u32 %v237, 4294901760
        %v873 = vsub.f32 %v237, %v872
        %874 = vmatmul.mubr.f32.gmra.mrb[0].mxu0 %v873
        %v875 = vpop.f32.mrb[0].mxu0
        %v876 = vadd.f32 %v678, %v875
        %v877 = vpop.f32.mrb[0].mxu0
        %878 = vmatprep.mubr.f32.mxu0 0.0
        %v879 = vand.u32 %v238, 4294901760
        %v880 = vsub.f32 %v238, %v879
        %881 = vmatmul.mubr.f32.gmra.mrb[0].mxu0 %v880
        %v882 = vpop.f32.mrb[0].mxu0
        %v883 = vadd.f32 %v684, %v882
        %v884 = vpop.f32.mrb[0].mxu0
        %885 = vmatprep.mubr.f32.mxu0 0.0
        %v886 = vand.u32 %v239, 4294901760
        %v887 = vsub.f32 %v239, %v886
        %888 = vmatmul.mubr.f32.gmra.mrb[0].mxu0 %v887
        %v889 = vpop.f32.mrb[0].mxu0
        %v890 = vadd.f32 %v690, %v889
        %v891 = vpop.f32.mrb[0].mxu0
        %892 = vmatprep.mubr.f32.mxu0 0.0
        %v893 = vand.u32 %v240, 4294901760
        %v894 = vsub.f32 %v240, %v893
        %895 = vmatmul.mubr.f32.gmra.mrb[0].mxu0 %v894
        %v896 = vpop.f32.mrb[0].mxu0
        %v897 = vadd.f32 %v696, %v896
        %v898 = vpop.f32.mrb[0].mxu0
        %899 = vmatprep.mubr.f32.mxu0 0.0
        %v900 = vand.u32 %v241, 4294901760
        %v901 = vsub.f32 %v241, %v900
        %902 = vmatmul.mubr.f32.gmra.mrb[0].mxu0 %v901
        %v903 = vpop.f32.mrb[0].mxu0
        %v904 = vadd.f32 %v702, %v903
        %v905 = vpop.f32.mrb[0].mxu0
        %906 = vmatprep.mubr.f32.mxu0 0.0
        %v907 = vand.u32 %v242, 4294901760
        %v908 = vsub.f32 %v242, %v907
        %909 = vmatmul.mubr.f32.gmra.mrb[0].mxu0 %v908
        %v910 = vpop.f32.mrb[0].mxu0
        %v911 = vadd.f32 %v708, %v910
        %v912 = vpop.f32.mrb[0].mxu0
        %913 = vmatprep.mubr.f32.mxu0 0.0
        %v914 = vand.u32 %v243, 4294901760
        %v915 = vsub.f32 %v243, %v914
        %916 = vmatmul.mubr.f32.gmra.mrb[0].mxu0 %v915
        %v917 = vpop.f32.mrb[0].mxu0
        %v918 = vadd.f32 %v714, %v917
        %v919 = vpop.f32.mrb[0].mxu0
        %920 = vmatprep.mubr.f32.mxu0 0.0
        %v921 = vand.u32 %v244, 4294901760
        %v922 = vsub.f32 %v244, %v921
        %923 = vmatmul.mubr.f32.gmra.mrb[0].mxu0 %v922
        %v924 = vpop.f32.mrb[0].mxu0
        %v925 = vadd.f32 %v720, %v924
        %v926 = vpop.f32.mrb[0].mxu0
        %927 = vmatprep.mubr.f32.mxu0 0.0
        %v928 = vand.u32 %v245, 4294901760
        %v929 = vsub.f32 %v245, %v928
        %930 = vmatmul.mubr.f32.gmra.mrb[0].mxu0 %v929
        %v931 = vpop.f32.mrb[0].mxu0
        %v932 = vadd.f32 %v726, %v931
        %v933 = vpop.f32.mrb[0].mxu0
        %934 = vmatprep.mubr.f32.mxu0 0.0
        %v935 = vand.u32 %v246, 4294901760
        %v936 = vsub.f32 %v246, %v935
        %937 = vmatmul.mubr.f32.gmra.mrb[0].mxu0 %v936
        %v938 = vpop.f32.mrb[0].mxu0
        %v939 = vadd.f32 %v732, %v938
        %v940 = vpop.f32.mrb[0].mxu0
        %941 = vmatprep.mubr.f32.mxu0 0.0
        %v942 = vand.u32 %v247, 4294901760
        %v943 = vsub.f32 %v247, %v942
        %944 = vmatmul.mubr.f32.gmra.mrb[0].mxu0 %v943
        %v945 = vpop.f32.mrb[0].mxu0
        %v946 = vadd.f32 %v738, %v945
        %v947 = vpop.f32.mrb[0].mxu0
        %948 = vmatprep.mubr.f32.mxu0 0.0
        %v949 = vand.u32 %v248, 4294901760
        %v950 = vsub.f32 %v248, %v949
        %951 = vmatmul.mubr.f32.gmra.mrb[0].mxu0 %v950
        %v952 = vpop.f32.mrb[0].mxu0
        %v953 = vadd.f32 %v744, %v952
        %v954 = vpop.f32.mrb[0].mxu0
        %955 = vdwg.mxu0
        %956 = vmatprep.subr.mxu0 0.0
        %v957 = vand.u32 %v249, 4294901760
        %958 = vmatpush1.msra.mxu0 %v957
        %959 = vmatprep.subr.mxu0 0.0
        %v960 = vand.u32 %v250, 4294901760
        %961 = vmatpush1.msra.mxu0 %v960
        %962 = vmatprep.subr.mxu0 0.0
        %v963 = vand.u32 %v251, 4294901760
        %964 = vmatpush1.msra.mxu0 %v963
        %965 = vmatprep.subr.mxu0 0.0
        %v966 = vand.u32 %v252, 4294901760
        %967 = vmatpush1.msra.mxu0 %v966
        %968 = vmatprep.subr.mxu0 0.0
        %v969 = vand.u32 %v253, 4294901760
        %970 = vmatpush1.msra.mxu0 %v969
        %971 = vmatprep.subr.mxu0 0.0
        %v972 = vand.u32 %v254, 4294901760
        %973 = vmatpush1.msra.mxu0 %v972
        %974 = vmatprep.subr.mxu0 0.0
        %v975 = vand.u32 %v255, 4294901760
        %976 = vmatpush1.msra.mxu0 %v975
        %977 = vmatprep.subr.mxu0 0.0
        %v978 = vand.u32 %v256, 4294901760
        %979 = vmatpush1.msra.mxu0 %v978
        %980 = vmatprep.subr.mxu0 0.0
        %v981 = vand.u32 %v257, 4294901760
        %982 = vmatpush1.msra.mxu0 %v981
        %983 = vmatprep.subr.mxu0 0.0
        %v984 = vand.u32 %v258, 4294901760
        %985 = vmatpush1.msra.mxu0 %v984
        %986 = vmatprep.subr.mxu0 0.0
        %v987 = vand.u32 %v259, 4294901760
        %988 = vmatpush1.msra.mxu0 %v987
        %989 = vmatprep.subr.mxu0 0.0
        %v990 = vand.u32 %v260, 4294901760
        %991 = vmatpush1.msra.mxu0 %v990
        %992 = vmatprep.subr.mxu0 0.0
        %v993 = vand.u32 %v261, 4294901760
        %994 = vmatpush1.msra.mxu0 %v993
        %995 = vmatprep.subr.mxu0 0.0
        %v996 = vand.u32 %v262, 4294901760
        %997 = vmatpush1.msra.mxu0 %v996
        %998 = vmatprep.subr.mxu0 0.0
        %v999 = vand.u32 %v263, 4294901760
        %1000 = vmatpush1.msra.mxu0 %v999
        %1001 = vmatprep.subr.mxu0 0.0
        %v1002 = vand.u32 %v264, 4294901760
        %1003 = vmatpush1.msra.mxu0 %v1002
        %1004 = vmatprep.subr.mxu0 0.0
        %1005 = vmatpush1.msra.mxu0 0.0
        %1006 = vmatprep.subr.mxu0 0.0
        %1007 = vmatpush1.msra.mxu0 0.0
        %1008 = vmatprep.subr.mxu0 0.0
        %1009 = vmatpush1.msra.mxu0 0.0
        %1010 = vmatprep.subr.mxu0 0.0
        %1011 = vmatpush1.msra.mxu0 0.0
        %1012 = vmatprep.subr.mxu0 0.0
        %1013 = vmatpush1.msra.mxu0 0.0
        %1014 = vmatprep.subr.mxu0 0.0
        %1015 = vmatpush1.msra.mxu0 0.0
        %1016 = vmatprep.subr.mxu0 0.0
        %1017 = vmatpush1.msra.mxu0 0.0
        %1018 = vmatprep.subr.mxu0 0.0
        %1019 = vmatpush1.msra.mxu0 0.0
        %1020 = vmatprep.subr.mxu0 0.0
        %1021 = vmatpush1.msra.mxu0 0.0
        %1022 = vmatprep.subr.mxu0 0.0
        %1023 = vmatpush1.msra.mxu0 0.0
        %1024 = vmatprep.subr.mxu0 0.0
        %1025 = vmatpush1.msra.mxu0 0.0
        %1026 = vmatprep.subr.mxu0 0.0
        %1027 = vmatpush1.msra.mxu0 0.0
        %1028 = vmatprep.subr.mxu0 0.0
        %1029 = vmatpush1.msra.mxu0 0.0
        %1030 = vmatprep.subr.mxu0 0.0
        %1031 = vmatpush1.msra.mxu0 0.0
        %1032 = vmatprep.subr.mxu0 0.0
        %1033 = vmatpush1.msra.mxu0 0.0
        %1034 = vmatprep.subr.mxu0 0.0
        %1035 = vmatpush1.msra.mxu0 0.0
        %1036 = vmatprep.mubr.f32.mxu0 0.0
        %v1037 = vand.u32 %v233, 4294901760
        %v1038 = vsub.f32 %v233, %v1037
        %v1039 = vand.u32 %v1038, 4294901760
        %1040 = vmatmul.mubr.f32.gmra.mrb[0].mxu0 %v1039
        %v1041 = vpop.f32.mrb[0].mxu0
        %v1042 = vadd.f32 %v848, %v1041
        %v1043 = vpop.f32.mrb[0].mxu0
        %1044 = vmatprep.mubr.f32.mxu0 0.0
        %v1045 = vand.u32 %v234, 4294901760
        %v1046 = vsub.f32 %v234, %v1045
        %v1047 = vand.u32 %v1046, 4294901760
        %1048 = vmatmul.mubr.f32.gmra.mrb[0].mxu0 %v1047
        %v1049 = vpop.f32.mrb[0].mxu0
        %v1050 = vadd.f32 %v855, %v1049
        %v1051 = vpop.f32.mrb[0].mxu0
        %1052 = vmatprep.mubr.f32.mxu0 0.0
        %v1053 = vand.u32 %v235, 4294901760
        %v1054 = vsub.f32 %v235, %v1053
        %v1055 = vand.u32 %v1054, 4294901760
        %1056 = vmatmul.mubr.f32.gmra.mrb[0].mxu0 %v1055
        %v1057 = vpop.f32.mrb[0].mxu0
        %v1058 = vadd.f32 %v862, %v1057
        %v1059 = vpop.f32.mrb[0].mxu0
        %1060 = vmatprep.mubr.f32.mxu0 0.0
        %v1061 = vand.u32 %v236, 4294901760
        %v1062 = vsub.f32 %v236, %v1061
        %v1063 = vand.u32 %v1062, 4294901760
        %1064 = vmatmul.mubr.f32.gmra.mrb[0].mxu0 %v1063
        %v1065 = vpop.f32.mrb[0].mxu0
        %v1066 = vadd.f32 %v869, %v1065
        %v1067 = vpop.f32.mrb[0].mxu0
        %1068 = vmatprep.mubr.f32.mxu0 0.0
        %v1069 = vand.u32 %v237, 4294901760
        %v1070 = vsub.f32 %v237, %v1069
        %v1071 = vand.u32 %v1070, 4294901760
        %1072 = vmatmul.mubr.f32.gmra.mrb[0].mxu0 %v1071
        %v1073 = vpop.f32.mrb[0].mxu0
        %v1074 = vadd.f32 %v876, %v1073
        %v1075 = vpop.f32.mrb[0].mxu0
        %1076 = vmatprep.mubr.f32.mxu0 0.0
        %v1077 = vand.u32 %v238, 4294901760
        %v1078 = vsub.f32 %v238, %v1077
        %v1079 = vand.u32 %v1078, 4294901760
        %1080 = vmatmul.mubr.f32.gmra.mrb[0].mxu0 %v1079
        %v1081 = vpop.f32.mrb[0].mxu0
        %v1082 = vadd.f32 %v883, %v1081
        %v1083 = vpop.f32.mrb[0].mxu0
        %1084 = vmatprep.mubr.f32.mxu0 0.0
        %v1085 = vand.u32 %v239, 4294901760
        %v1086 = vsub.f32 %v239, %v1085
        %v1087 = vand.u32 %v1086, 4294901760
        %1088 = vmatmul.mubr.f32.gmra.mrb[0].mxu0 %v1087
        %v1089 = vpop.f32.mrb[0].mxu0
        %v1090 = vadd.f32 %v890, %v1089
        %v1091 = vpop.f32.mrb[0].mxu0
        %1092 = vmatprep.mubr.f32.mxu0 0.0
        %v1093 = vand.u32 %v240, 4294901760
        %v1094 = vsub.f32 %v240, %v1093
        %v1095 = vand.u32 %v1094, 4294901760
        %1096 = vmatmul.mubr.f32.gmra.mrb[0].mxu0 %v1095
        %v1097 = vpop.f32.mrb[0].mxu0
        %v1098 = vadd.f32 %v897, %v1097
        %v1099 = vpop.f32.mrb[0].mxu0
        %1100 = vmatprep.mubr.f32.mxu0 0.0
        %v1101 = vand.u32 %v241, 4294901760
        %v1102 = vsub.f32 %v241, %v1101
        %v1103 = vand.u32 %v1102, 4294901760
        %1104 = vmatmul.mubr.f32.gmra.mrb[0].mxu0 %v1103
        %v1105 = vpop.f32.mrb[0].mxu0
        %v1106 = vadd.f32 %v904, %v1105
        %v1107 = vpop.f32.mrb[0].mxu0
        %1108 = vmatprep.mubr.f32.mxu0 0.0
        %v1109 = vand.u32 %v242, 4294901760
        %v1110 = vsub.f32 %v242, %v1109
        %v1111 = vand.u32 %v1110, 4294901760
        %1112 = vmatmul.mubr.f32.gmra.mrb[0].mxu0 %v1111
        %v1113 = vpop.f32.mrb[0].mxu0
        %v1114 = vadd.f32 %v911, %v1113
        %v1115 = vpop.f32.mrb[0].mxu0
        %1116 = vmatprep.mubr.f32.mxu0 0.0
        %v1117 = vand.u32 %v243, 4294901760
        %v1118 = vsub.f32 %v243, %v1117
        %v1119 = vand.u32 %v1118, 4294901760
        %1120 = vmatmul.mubr.f32.gmra.mrb[0].mxu0 %v1119
        %v1121 = vpop.f32.mrb[0].mxu0
        %v1122 = vadd.f32 %v918, %v1121
        %v1123 = vpop.f32.mrb[0].mxu0
        %1124 = vmatprep.mubr.f32.mxu0 0.0
        %v1125 = vand.u32 %v244, 4294901760
        %v1126 = vsub.f32 %v244, %v1125
        %v1127 = vand.u32 %v1126, 4294901760
        %1128 = vmatmul.mubr.f32.gmra.mrb[0].mxu0 %v1127
        %v1129 = vpop.f32.mrb[0].mxu0
        %v1130 = vadd.f32 %v925, %v1129
        %v1131 = vpop.f32.mrb[0].mxu0
        %1132 = vmatprep.mubr.f32.mxu0 0.0
        %v1133 = vand.u32 %v245, 4294901760
        %v1134 = vsub.f32 %v245, %v1133
        %v1135 = vand.u32 %v1134, 4294901760
        %1136 = vmatmul.mubr.f32.gmra.mrb[0].mxu0 %v1135
        %v1137 = vpop.f32.mrb[0].mxu0
        %v1138 = vadd.f32 %v932, %v1137
        %v1139 = vpop.f32.mrb[0].mxu0
        %1140 = vmatprep.mubr.f32.mxu0 0.0
        %v1141 = vand.u32 %v246, 4294901760
        %v1142 = vsub.f32 %v246, %v1141
        %v1143 = vand.u32 %v1142, 4294901760
        %1144 = vmatmul.mubr.f32.gmra.mrb[0].mxu0 %v1143
        %v1145 = vpop.f32.mrb[0].mxu0
        %v1146 = vadd.f32 %v939, %v1145
        %v1147 = vpop.f32.mrb[0].mxu0
        %1148 = vmatprep.mubr.f32.mxu0 0.0
        %v1149 = vand.u32 %v247, 4294901760
        %v1150 = vsub.f32 %v247, %v1149
        %v1151 = vand.u32 %v1150, 4294901760
        %1152 = vmatmul.mubr.f32.gmra.mrb[0].mxu0 %v1151
        %v1153 = vpop.f32.mrb[0].mxu0
        %v1154 = vadd.f32 %v946, %v1153
        %v1155 = vpop.f32.mrb[0].mxu0
        %1156 = vmatprep.mubr.f32.mxu0 0.0
        %v1157 = vand.u32 %v248, 4294901760
        %v1158 = vsub.f32 %v248, %v1157
        %v1159 = vand.u32 %v1158, 4294901760
        %1160 = vmatmul.mubr.f32.gmra.mrb[0].mxu0 %v1159
        %v1161 = vpop.f32.mrb[0].mxu0
        %v1162 = vadd.f32 %v953, %v1161
        %v1163 = vpop.f32.mrb[0].mxu0
        %1164 = vdwg.mxu0
        %1165 = vmatprep.subr.mxu0 0.0
        %v1166 = vand.u32 %v249, 4294901760
        %v1167 = vsub.f32 %v249, %v1166
        %v1168 = vand.u32 %v1167, 4294901760
        %1169 = vmatpush1.msra.mxu0 %v1168
        %1170 = vmatprep.subr.mxu0 0.0
        %v1171 = vand.u32 %v250, 4294901760
        %v1172 = vsub.f32 %v250, %v1171
        %v1173 = vand.u32 %v1172, 4294901760
        %1174 = vmatpush1.msra.mxu0 %v1173
        %1175 = vmatprep.subr.mxu0 0.0
        %v1176 = vand.u32 %v251, 4294901760
        %v1177 = vsub.f32 %v251, %v1176
        %v1178 = vand.u32 %v1177, 4294901760
        %1179 = vmatpush1.msra.mxu0 %v1178
        %1180 = vmatprep.subr.mxu0 0.0
        %v1181 = vand.u32 %v252, 4294901760
        %v1182 = vsub.f32 %v252, %v1181
        %v1183 = vand.u32 %v1182, 4294901760
        %1184 = vmatpush1.msra.mxu0 %v1183
        %1185 = vmatprep.subr.mxu0 0.0
        %v1186 = vand.u32 %v253, 4294901760
        %v1187 = vsub.f32 %v253, %v1186
        %v1188 = vand.u32 %v1187, 4294901760
        %1189 = vmatpush1.msra.mxu0 %v1188
        %1190 = vmatprep.subr.mxu0 0.0
        %v1191 = vand.u32 %v254, 4294901760
        %v1192 = vsub.f32 %v254, %v1191
        %v1193 = vand.u32 %v1192, 4294901760
        %1194 = vmatpush1.msra.mxu0 %v1193
        %1195 = vmatprep.subr.mxu0 0.0
        %v1196 = vand.u32 %v255, 4294901760
        %v1197 = vsub.f32 %v255, %v1196
        %v1198 = vand.u32 %v1197, 4294901760
        %1199 = vmatpush1.msra.mxu0 %v1198
        %1200 = vmatprep.subr.mxu0 0.0
        %v1201 = vand.u32 %v256, 4294901760
        %v1202 = vsub.f32 %v256, %v1201
        %v1203 = vand.u32 %v1202, 4294901760
        %1204 = vmatpush1.msra.mxu0 %v1203
        %1205 = vmatprep.subr.mxu0 0.0
        %v1206 = vand.u32 %v257, 4294901760
        %v1207 = vsub.f32 %v257, %v1206
        %v1208 = vand.u32 %v1207, 4294901760
        %1209 = vmatpush1.msra.mxu0 %v1208
        %1210 = vmatprep.subr.mxu0 0.0
        %v1211 = vand.u32 %v258, 4294901760
        %v1212 = vsub.f32 %v258, %v1211
        %v1213 = vand.u32 %v1212, 4294901760
        %1214 = vmatpush1.msra.mxu0 %v1213
        %1215 = vmatprep.subr.mxu0 0.0
        %v1216 = vand.u32 %v259, 4294901760
        %v1217 = vsub.f32 %v259, %v1216
        %v1218 = vand.u32 %v1217, 4294901760
        %1219 = vmatpush1.msra.mxu0 %v1218
        %1220 = vmatprep.subr.mxu0 0.0
        %v1221 = vand.u32 %v260, 4294901760
        %v1222 = vsub.f32 %v260, %v1221
        %v1223 = vand.u32 %v1222, 4294901760
        %1224 = vmatpush1.msra.mxu0 %v1223
        %1225 = vmatprep.subr.mxu0 0.0
        %v1226 = vand.u32 %v261, 4294901760
        %v1227 = vsub.f32 %v261, %v1226
        %v1228 = vand.u32 %v1227, 4294901760
        %1229 = vmatpush1.msra.mxu0 %v1228
        %1230 = vmatprep.subr.mxu0 0.0
        %v1231 = vand.u32 %v262, 4294901760
        %v1232 = vsub.f32 %v262, %v1231
        %v1233 = vand.u32 %v1232, 4294901760
        %1234 = vmatpush1.msra.mxu0 %v1233
        %1235 = vmatprep.subr.mxu0 0.0
        %v1236 = vand.u32 %v263, 4294901760
        %v1237 = vsub.f32 %v263, %v1236
        %v1238 = vand.u32 %v1237, 4294901760
        %1239 = vmatpush1.msra.mxu0 %v1238
        %1240 = vmatprep.subr.mxu0 0.0
        %v1241 = vand.u32 %v264, 4294901760
        %v1242 = vsub.f32 %v264, %v1241
        %v1243 = vand.u32 %v1242, 4294901760
        %1244 = vmatpush1.msra.mxu0 %v1243
        %1245 = vmatprep.subr.mxu0 0.0
        %1246 = vmatpush1.msra.mxu0 0.0
        %1247 = vmatprep.subr.mxu0 0.0
        %1248 = vmatpush1.msra.mxu0 0.0
        %1249 = vmatprep.subr.mxu0 0.0
        %1250 = vmatpush1.msra.mxu0 0.0
        %1251 = vmatprep.subr.mxu0 0.0
        %1252 = vmatpush1.msra.mxu0 0.0
        %1253 = vmatprep.subr.mxu0 0.0
        %1254 = vmatpush1.msra.mxu0 0.0
        %1255 = vmatprep.subr.mxu0 0.0
        %1256 = vmatpush1.msra.mxu0 0.0
        %1257 = vmatprep.subr.mxu0 0.0
        %1258 = vmatpush1.msra.mxu0 0.0
        %1259 = vmatprep.subr.mxu0 0.0
        %1260 = vmatpush1.msra.mxu0 0.0
        %1261 = vmatprep.subr.mxu0 0.0
        %1262 = vmatpush1.msra.mxu0 0.0
        %1263 = vmatprep.subr.mxu0 0.0
        %1264 = vmatpush1.msra.mxu0 0.0
        %1265 = vmatprep.subr.mxu0 0.0
        %1266 = vmatpush1.msra.mxu0 0.0
        %1267 = vmatprep.subr.mxu0 0.0
        %1268 = vmatpush1.msra.mxu0 0.0
        %1269 = vmatprep.subr.mxu0 0.0
        %1270 = vmatpush1.msra.mxu0 0.0
        %1271 = vmatprep.subr.mxu0 0.0
        %1272 = vmatpush1.msra.mxu0 0.0
        %1273 = vmatprep.subr.mxu0 0.0
        %1274 = vmatpush1.msra.mxu0 0.0
        %1275 = vmatprep.subr.mxu0 0.0
        %1276 = vmatpush1.msra.mxu0 0.0
        %1277 = vmatprep.mubr.f32.mxu0 0.0
        %v1278 = vand.u32 %v233, 4294901760
        %1279 = vmatmul.mubr.f32.gmra.mrb[0].mxu0 %v1278
        %v1280 = vpop.f32.mrb[0].mxu0
        %v1281 = vadd.f32 %v1042, %v1280
        %v1282 = vpop.f32.mrb[0].mxu0
        %1283 = vmatprep.mubr.f32.mxu0 0.0
        %v1284 = vand.u32 %v234, 4294901760
        %1285 = vmatmul.mubr.f32.gmra.mrb[0].mxu0 %v1284
        %v1286 = vpop.f32.mrb[0].mxu0
        %v1287 = vadd.f32 %v1050, %v1286
        %v1288 = vpop.f32.mrb[0].mxu0
        %1289 = vmatprep.mubr.f32.mxu0 0.0
        %v1290 = vand.u32 %v235, 4294901760
        %1291 = vmatmul.mubr.f32.gmra.mrb[0].mxu0 %v1290
        %v1292 = vpop.f32.mrb[0].mxu0
        %v1293 = vadd.f32 %v1058, %v1292
        %v1294 = vpop.f32.mrb[0].mxu0
        %1295 = vmatprep.mubr.f32.mxu0 0.0
        %v1296 = vand.u32 %v236, 4294901760
        %1297 = vmatmul.mubr.f32.gmra.mrb[0].mxu0 %v1296
        %v1298 = vpop.f32.mrb[0].mxu0
        %v1299 = vadd.f32 %v1066, %v1298
        %v1300 = vpop.f32.mrb[0].mxu0
        %1301 = vmatprep.mubr.f32.mxu0 0.0
        %v1302 = vand.u32 %v237, 4294901760
        %1303 = vmatmul.mubr.f32.gmra.mrb[0].mxu0 %v1302
        %v1304 = vpop.f32.mrb[0].mxu0
        %v1305 = vadd.f32 %v1074, %v1304
        %v1306 = vpop.f32.mrb[0].mxu0
        %1307 = vmatprep.mubr.f32.mxu0 0.0
        %v1308 = vand.u32 %v238, 4294901760
        %1309 = vmatmul.mubr.f32.gmra.mrb[0].mxu0 %v1308
        %v1310 = vpop.f32.mrb[0].mxu0
        %v1311 = vadd.f32 %v1082, %v1310
        %v1312 = vpop.f32.mrb[0].mxu0
        %1313 = vmatprep.mubr.f32.mxu0 0.0
        %v1314 = vand.u32 %v239, 4294901760
        %1315 = vmatmul.mubr.f32.gmra.mrb[0].mxu0 %v1314
        %v1316 = vpop.f32.mrb[0].mxu0
        %v1317 = vadd.f32 %v1090, %v1316
        %v1318 = vpop.f32.mrb[0].mxu0
        %1319 = vmatprep.mubr.f32.mxu0 0.0
        %v1320 = vand.u32 %v240, 4294901760
        %1321 = vmatmul.mubr.f32.gmra.mrb[0].mxu0 %v1320
        %v1322 = vpop.f32.mrb[0].mxu0
        %v1323 = vadd.f32 %v1098, %v1322
        %v1324 = vpop.f32.mrb[0].mxu0
        %1325 = vmatprep.mubr.f32.mxu0 0.0
        %v1326 = vand.u32 %v241, 4294901760
        %1327 = vmatmul.mubr.f32.gmra.mrb[0].mxu0 %v1326
        %v1328 = vpop.f32.mrb[0].mxu0
        %v1329 = vadd.f32 %v1106, %v1328
        %v1330 = vpop.f32.mrb[0].mxu0
        %1331 = vmatprep.mubr.f32.mxu0 0.0
        %v1332 = vand.u32 %v242, 4294901760
        %1333 = vmatmul.mubr.f32.gmra.mrb[0].mxu0 %v1332
        %v1334 = vpop.f32.mrb[0].mxu0
        %v1335 = vadd.f32 %v1114, %v1334
        %v1336 = vpop.f32.mrb[0].mxu0
        %1337 = vmatprep.mubr.f32.mxu0 0.0
        %v1338 = vand.u32 %v243, 4294901760
        %1339 = vmatmul.mubr.f32.gmra.mrb[0].mxu0 %v1338
        %v1340 = vpop.f32.mrb[0].mxu0
        %v1341 = vadd.f32 %v1122, %v1340
        %v1342 = vpop.f32.mrb[0].mxu0
        %1343 = vmatprep.mubr.f32.mxu0 0.0
        %v1344 = vand.u32 %v244, 4294901760
        %1345 = vmatmul.mubr.f32.gmra.mrb[0].mxu0 %v1344
        %v1346 = vpop.f32.mrb[0].mxu0
        %v1347 = vadd.f32 %v1130, %v1346
        %v1348 = vpop.f32.mrb[0].mxu0
        %1349 = vmatprep.mubr.f32.mxu0 0.0
        %v1350 = vand.u32 %v245, 4294901760
        %1351 = vmatmul.mubr.f32.gmra.mrb[0].mxu0 %v1350
        %v1352 = vpop.f32.mrb[0].mxu0
        %v1353 = vadd.f32 %v1138, %v1352
        %v1354 = vpop.f32.mrb[0].mxu0
        %1355 = vmatprep.mubr.f32.mxu0 0.0
        %v1356 = vand.u32 %v246, 4294901760
        %1357 = vmatmul.mubr.f32.gmra.mrb[0].mxu0 %v1356
        %v1358 = vpop.f32.mrb[0].mxu0
        %v1359 = vadd.f32 %v1146, %v1358
        %v1360 = vpop.f32.mrb[0].mxu0
        %1361 = vmatprep.mubr.f32.mxu0 0.0
        %v1362 = vand.u32 %v247, 4294901760
        %1363 = vmatmul.mubr.f32.gmra.mrb[0].mxu0 %v1362
        %v1364 = vpop.f32.mrb[0].mxu0
        %v1365 = vadd.f32 %v1154, %v1364
        %v1366 = vpop.f32.mrb[0].mxu0
        %1367 = vmatprep.mubr.f32.mxu0 0.0
        %v1368 = vand.u32 %v248, 4294901760
        %1369 = vmatmul.mubr.f32.gmra.mrb[0].mxu0 %v1368
        %v1370 = vpop.f32.mrb[0].mxu0
        %v1371 = vadd.f32 %v1162, %v1370
        %v1372 = vpop.f32.mrb[0].mxu0
        %1373 = vdwg.mxu0
        %1374 = vmatprep.subr.mxu0 0.0
        %v1375 = vand.u32 %v249, 4294901760
        %1376 = vmatpush1.msra.mxu0 %v1375
        %1377 = vmatprep.subr.mxu0 0.0
        %v1378 = vand.u32 %v250, 4294901760
        %1379 = vmatpush1.msra.mxu0 %v1378
        %1380 = vmatprep.subr.mxu0 0.0
        %v1381 = vand.u32 %v251, 4294901760
        %1382 = vmatpush1.msra.mxu0 %v1381
        %1383 = vmatprep.subr.mxu0 0.0
        %v1384 = vand.u32 %v252, 4294901760
        %1385 = vmatpush1.msra.mxu0 %v1384
        %1386 = vmatprep.subr.mxu0 0.0
        %v1387 = vand.u32 %v253, 4294901760
        %1388 = vmatpush1.msra.mxu0 %v1387
        %1389 = vmatprep.subr.mxu0 0.0
        %v1390 = vand.u32 %v254, 4294901760
        %1391 = vmatpush1.msra.mxu0 %v1390
        %1392 = vmatprep.subr.mxu0 0.0
        %v1393 = vand.u32 %v255, 4294901760
        %1394 = vmatpush1.msra.mxu0 %v1393
        %1395 = vmatprep.subr.mxu0 0.0
        %v1396 = vand.u32 %v256, 4294901760
        %1397 = vmatpush1.msra.mxu0 %v1396
        %1398 = vmatprep.subr.mxu0 0.0
        %v1399 = vand.u32 %v257, 4294901760
        %1400 = vmatpush1.msra.mxu0 %v1399
        %1401 = vmatprep.subr.mxu0 0.0
        %v1402 = vand.u32 %v258, 4294901760
        %1403 = vmatpush1.msra.mxu0 %v1402
        %1404 = vmatprep.subr.mxu0 0.0
        %v1405 = vand.u32 %v259, 4294901760
        %1406 = vmatpush1.msra.mxu0 %v1405
        %1407 = vmatprep.subr.mxu0 0.0
        %v1408 = vand.u32 %v260, 4294901760
        %1409 = vmatpush1.msra.mxu0 %v1408
        %1410 = vmatprep.subr.mxu0 0.0
        %v1411 = vand.u32 %v261, 4294901760
        %1412 = vmatpush1.msra.mxu0 %v1411
        %1413 = vmatprep.subr.mxu0 0.0
        %v1414 = vand.u32 %v262, 4294901760
        %1415 = vmatpush1.msra.mxu0 %v1414
        %1416 = vmatprep.subr.mxu0 0.0
        %v1417 = vand.u32 %v263, 4294901760
        %1418 = vmatpush1.msra.mxu0 %v1417
        %1419 = vmatprep.subr.mxu0 0.0
        %v1420 = vand.u32 %v264, 4294901760
        %1421 = vmatpush1.msra.mxu0 %v1420
        %1422 = vmatprep.subr.mxu0 0.0
        %1423 = vmatpush1.msra.mxu0 0.0
        %1424 = vmatprep.subr.mxu0 0.0
        %1425 = vmatpush1.msra.mxu0 0.0
        %1426 = vmatprep.subr.mxu0 0.0
        %1427 = vmatpush1.msra.mxu0 0.0
        %1428 = vmatprep.subr.mxu0 0.0
        %1429 = vmatpush1.msra.mxu0 0.0
        %1430 = vmatprep.subr.mxu0 0.0
        %1431 = vmatpush1.msra.mxu0 0.0
        %1432 = vmatprep.subr.mxu0 0.0
        %1433 = vmatpush1.msra.mxu0 0.0
        %1434 = vmatprep.subr.mxu0 0.0
        %1435 = vmatpush1.msra.mxu0 0.0
        %1436 = vmatprep.subr.mxu0 0.0
        %1437 = vmatpush1.msra.mxu0 0.0
        %1438 = vmatprep.subr.mxu0 0.0
        %1439 = vmatpush1.msra.mxu0 0.0
        %1440 = vmatprep.subr.mxu0 0.0
        %1441 = vmatpush1.msra.mxu0 0.0
        %1442 = vmatprep.subr.mxu0 0.0
        %1443 = vmatpush1.msra.mxu0 0.0
        %1444 = vmatprep.subr.mxu0 0.0
        %1445 = vmatpush1.msra.mxu0 0.0
        %1446 = vmatprep.subr.mxu0 0.0
        %1447 = vmatpush1.msra.mxu0 0.0
        %1448 = vmatprep.subr.mxu0 0.0
        %1449 = vmatpush1.msra.mxu0 0.0
        %1450 = vmatprep.subr.mxu0 0.0
        %1451 = vmatpush1.msra.mxu0 0.0
        %1452 = vmatprep.subr.mxu0 0.0
        %1453 = vmatpush1.msra.mxu0 0.0
        %1454 = vmatprep.mubr.f32.mxu0 0.0
        %v1455 = vand.u32 %v233, 4294901760
        %1456 = vmatmul.mubr.f32.gmra.mrb[0].mxu0 %v1455
        %v1457 = vpop.f32.mrb[0].mxu0
        %v1458 = vadd.f32 %v1281, %v1457
        %v1459 = vpop.f32.mrb[0].mxu0
        %1460 = vmatprep.mubr.f32.mxu0 0.0
        %v1461 = vand.u32 %v234, 4294901760
        %1462 = vmatmul.mubr.f32.gmra.mrb[0].mxu0 %v1461
        %v1463 = vpop.f32.mrb[0].mxu0
        %v1464 = vadd.f32 %v1287, %v1463
        %v1465 = vpop.f32.mrb[0].mxu0
        %1466 = vmatprep.mubr.f32.mxu0 0.0
        %v1467 = vand.u32 %v235, 4294901760
        %1468 = vmatmul.mubr.f32.gmra.mrb[0].mxu0 %v1467
        %v1469 = vpop.f32.mrb[0].mxu0
        %v1470 = vadd.f32 %v1293, %v1469
        %v1471 = vpop.f32.mrb[0].mxu0
        %1472 = vmatprep.mubr.f32.mxu0 0.0
        %v1473 = vand.u32 %v236, 4294901760
        %1474 = vmatmul.mubr.f32.gmra.mrb[0].mxu0 %v1473
        %v1475 = vpop.f32.mrb[0].mxu0
        %v1476 = vadd.f32 %v1299, %v1475
        %v1477 = vpop.f32.mrb[0].mxu0
        %1478 = vmatprep.mubr.f32.mxu0 0.0
        %v1479 = vand.u32 %v237, 4294901760
        %1480 = vmatmul.mubr.f32.gmra.mrb[0].mxu0 %v1479
        %v1481 = vpop.f32.mrb[0].mxu0
        %v1482 = vadd.f32 %v1305, %v1481
        %v1483 = vpop.f32.mrb[0].mxu0
        %1484 = vmatprep.mubr.f32.mxu0 0.0
        %v1485 = vand.u32 %v238, 4294901760
        %1486 = vmatmul.mubr.f32.gmra.mrb[0].mxu0 %v1485
        %v1487 = vpop.f32.mrb[0].mxu0
        %v1488 = vadd.f32 %v1311, %v1487
        %v1489 = vpop.f32.mrb[0].mxu0
        %1490 = vmatprep.mubr.f32.mxu0 0.0
        %v1491 = vand.u32 %v239, 4294901760
        %1492 = vmatmul.mubr.f32.gmra.mrb[0].mxu0 %v1491
        %v1493 = vpop.f32.mrb[0].mxu0
        %v1494 = vadd.f32 %v1317, %v1493
        %v1495 = vpop.f32.mrb[0].mxu0
        %1496 = vmatprep.mubr.f32.mxu0 0.0
        %v1497 = vand.u32 %v240, 4294901760
        %1498 = vmatmul.mubr.f32.gmra.mrb[0].mxu0 %v1497
        %v1499 = vpop.f32.mrb[0].mxu0
        %v1500 = vadd.f32 %v1323, %v1499
        %v1501 = vpop.f32.mrb[0].mxu0
        %1502 = vmatprep.mubr.f32.mxu0 0.0
        %v1503 = vand.u32 %v241, 4294901760
        %1504 = vmatmul.mubr.f32.gmra.mrb[0].mxu0 %v1503
        %v1505 = vpop.f32.mrb[0].mxu0
        %v1506 = vadd.f32 %v1329, %v1505
        %v1507 = vpop.f32.mrb[0].mxu0
        %1508 = vmatprep.mubr.f32.mxu0 0.0
        %v1509 = vand.u32 %v242, 4294901760
        %1510 = vmatmul.mubr.f32.gmra.mrb[0].mxu0 %v1509
        %v1511 = vpop.f32.mrb[0].mxu0
        %v1512 = vadd.f32 %v1335, %v1511
        %v1513 = vpop.f32.mrb[0].mxu0
        %1514 = vmatprep.mubr.f32.mxu0 0.0
        %v1515 = vand.u32 %v243, 4294901760
        %1516 = vmatmul.mubr.f32.gmra.mrb[0].mxu0 %v1515
        %v1517 = vpop.f32.mrb[0].mxu0
        %v1518 = vadd.f32 %v1341, %v1517
        %v1519 = vpop.f32.mrb[0].mxu0
        %1520 = vmatprep.mubr.f32.mxu0 0.0
        %v1521 = vand.u32 %v244, 4294901760
        %1522 = vmatmul.mubr.f32.gmra.mrb[0].mxu0 %v1521
        %v1523 = vpop.f32.mrb[0].mxu0
        %v1524 = vadd.f32 %v1347, %v1523
        %v1525 = vpop.f32.mrb[0].mxu0
        %1526 = vmatprep.mubr.f32.mxu0 0.0
        %v1527 = vand.u32 %v245, 4294901760
        %1528 = vmatmul.mubr.f32.gmra.mrb[0].mxu0 %v1527
        %v1529 = vpop.f32.mrb[0].mxu0
        %v1530 = vadd.f32 %v1353, %v1529
        %v1531 = vpop.f32.mrb[0].mxu0
        %1532 = vmatprep.mubr.f32.mxu0 0.0
        %v1533 = vand.u32 %v246, 4294901760
        %1534 = vmatmul.mubr.f32.gmra.mrb[0].mxu0 %v1533
        %v1535 = vpop.f32.mrb[0].mxu0
        %v1536 = vadd.f32 %v1359, %v1535
        %v1537 = vpop.f32.mrb[0].mxu0
        %1538 = vmatprep.mubr.f32.mxu0 0.0
        %v1539 = vand.u32 %v247, 4294901760
        %1540 = vmatmul.mubr.f32.gmra.mrb[0].mxu0 %v1539
        %v1541 = vpop.f32.mrb[0].mxu0
        %v1542 = vadd.f32 %v1365, %v1541
        %v1543 = vpop.f32.mrb[0].mxu0
        %1544 = vmatprep.mubr.f32.mxu0 0.0
        %v1545 = vand.u32 %v248, 4294901760
        %1546 = vmatmul.mubr.f32.gmra.mrb[0].mxu0 %v1545
        %v1547 = vpop.f32.mrb[0].mxu0
        %v1548 = vadd.f32 %v1371, %v1547
        %v1549 = vpop.f32.mrb[0].mxu0
        %1550 = vdwg.mxu0
        %v1551 = vmul.f32 %v1458, 0.015625
        %v1552 = vmul.f32 %v1464, 0.015625
        %v1553 = vmul.f32 %v1470, 0.015625
        %v1554 = vmul.f32 %v1476, 0.015625
        %v1555 = vmul.f32 %v1482, 0.015625
        %v1556 = vmul.f32 %v1488, 0.015625
        %v1557 = vmul.f32 %v1494, 0.015625
        %v1558 = vmul.f32 %v1500, 0.015625
        %v1559 = vmul.f32 %v1506, 0.015625
        %v1560 = vmul.f32 %v1512, 0.015625
        %v1561 = vmul.f32 %v1518, 0.015625
        %v1562 = vmul.f32 %v1524, 0.015625
        %v1563 = vmul.f32 %v1530, 0.015625
        %v1564 = vmul.f32 %v1536, 0.015625
        %v1565 = vmul.f32 %v1542, 0.015625
        %v1566 = vmul.f32 %v1548, 0.015625
        %v1567 = vsub.f32 %v233, %v1551
        %v1568 = vsub.f32 %v234, %v1552
        %v1569 = vsub.f32 %v235, %v1553
        %v1570 = vsub.f32 %v236, %v1554
        %v1571 = vsub.f32 %v237, %v1555
        %v1572 = vsub.f32 %v238, %v1556
        %v1573 = vsub.f32 %v239, %v1557
        %v1574 = vsub.f32 %v240, %v1558
        %v1575 = vsub.f32 %v241, %v1559
        %v1576 = vsub.f32 %v242, %v1560
        %v1577 = vsub.f32 %v243, %v1561
        %v1578 = vsub.f32 %v244, %v1562
        %v1579 = vsub.f32 %v245, %v1563
        %v1580 = vsub.f32 %v246, %v1564
        %v1581 = vsub.f32 %v247, %v1565
        %v1582 = vsub.f32 %v248, %v1566
        %v1583 = vmul.f32 %v1567, %v1567
        %v1584 = vmul.f32 %v1568, %v1568
        %v1585 = vmul.f32 %v1569, %v1569
        %v1586 = vmul.f32 %v1570, %v1570
        %v1587 = vmul.f32 %v1571, %v1571
        %v1588 = vmul.f32 %v1572, %v1572
        %v1589 = vmul.f32 %v1573, %v1573
        %v1590 = vmul.f32 %v1574, %v1574
        %v1591 = vmul.f32 %v1575, %v1575
        %v1592 = vmul.f32 %v1576, %v1576
        %v1593 = vmul.f32 %v1577, %v1577
        %v1594 = vmul.f32 %v1578, %v1578
        %v1595 = vmul.f32 %v1579, %v1579
        %v1596 = vmul.f32 %v1580, %v1580
        %v1597 = vmul.f32 %v1581, %v1581
        %v1598 = vmul.f32 %v1582, %v1582
        %1599 = vmatprep.subr.mxu0 0.0
        %v1600 = vand.u32 %v249, 4294901760
        %1601 = vmatpush1.msra.mxu0 %v1600
        %1602 = vmatprep.subr.mxu0 0.0
        %v1603 = vand.u32 %v250, 4294901760
        %1604 = vmatpush1.msra.mxu0 %v1603
        %1605 = vmatprep.subr.mxu0 0.0
        %v1606 = vand.u32 %v251, 4294901760
        %1607 = vmatpush1.msra.mxu0 %v1606
        %1608 = vmatprep.subr.mxu0 0.0
        %v1609 = vand.u32 %v252, 4294901760
        %1610 = vmatpush1.msra.mxu0 %v1609
        %1611 = vmatprep.subr.mxu0 0.0
        %v1612 = vand.u32 %v253, 4294901760
        %1613 = vmatpush1.msra.mxu0 %v1612
        %1614 = vmatprep.subr.mxu0 0.0
        %v1615 = vand.u32 %v254, 4294901760
        %1616 = vmatpush1.msra.mxu0 %v1615
        %1617 = vmatprep.subr.mxu0 0.0
        %v1618 = vand.u32 %v255, 4294901760
        %1619 = vmatpush1.msra.mxu0 %v1618
        %1620 = vmatprep.subr.mxu0 0.0
        %v1621 = vand.u32 %v256, 4294901760
        %1622 = vmatpush1.msra.mxu0 %v1621
        %1623 = vmatprep.subr.mxu0 0.0
        %v1624 = vand.u32 %v257, 4294901760
        %1625 = vmatpush1.msra.mxu0 %v1624
        %1626 = vmatprep.subr.mxu0 0.0
        %v1627 = vand.u32 %v258, 4294901760
        %1628 = vmatpush1.msra.mxu0 %v1627
        %1629 = vmatprep.subr.mxu0 0.0
        %v1630 = vand.u32 %v259, 4294901760
        %1631 = vmatpush1.msra.mxu0 %v1630
        %1632 = vmatprep.subr.mxu0 0.0
        %v1633 = vand.u32 %v260, 4294901760
        %1634 = vmatpush1.msra.mxu0 %v1633
        %1635 = vmatprep.subr.mxu0 0.0
        %v1636 = vand.u32 %v261, 4294901760
        %1637 = vmatpush1.msra.mxu0 %v1636
        %1638 = vmatprep.subr.mxu0 0.0
        %v1639 = vand.u32 %v262, 4294901760
        %1640 = vmatpush1.msra.mxu0 %v1639
        %1641 = vmatprep.subr.mxu0 0.0
        %v1642 = vand.u32 %v263, 4294901760
        %1643 = vmatpush1.msra.mxu0 %v1642
        %1644 = vmatprep.subr.mxu0 0.0
        %v1645 = vand.u32 %v264, 4294901760
        %1646 = vmatpush1.msra.mxu0 %v1645
        %1647 = vmatprep.subr.mxu0 0.0
        %1648 = vmatpush1.msra.mxu0 0.0
        %1649 = vmatprep.subr.mxu0 0.0
        %1650 = vmatpush1.msra.mxu0 0.0
        %1651 = vmatprep.subr.mxu0 0.0
        %1652 = vmatpush1.msra.mxu0 0.0
        %1653 = vmatprep.subr.mxu0 0.0
        %1654 = vmatpush1.msra.mxu0 0.0
        %1655 = vmatprep.subr.mxu0 0.0
        %1656 = vmatpush1.msra.mxu0 0.0
        %1657 = vmatprep.subr.mxu0 0.0
        %1658 = vmatpush1.msra.mxu0 0.0
        %1659 = vmatprep.subr.mxu0 0.0
        %1660 = vmatpush1.msra.mxu0 0.0
        %1661 = vmatprep.subr.mxu0 0.0
        %1662 = vmatpush1.msra.mxu0 0.0
        %1663 = vmatprep.subr.mxu0 0.0
        %1664 = vmatpush1.msra.mxu0 0.0
        %1665 = vmatprep.subr.mxu0 0.0
        %1666 = vmatpush1.msra.mxu0 0.0
        %1667 = vmatprep.subr.mxu0 0.0
        %1668 = vmatpush1.msra.mxu0 0.0
        %1669 = vmatprep.subr.mxu0 0.0
        %1670 = vmatpush1.msra.mxu0 0.0
        %1671 = vmatprep.subr.mxu0 0.0
        %1672 = vmatpush1.msra.mxu0 0.0
        %1673 = vmatprep.subr.mxu0 0.0
        %1674 = vmatpush1.msra.mxu0 0.0
        %1675 = vmatprep.subr.mxu0 0.0
        %1676 = vmatpush1.msra.mxu0 0.0
        %1677 = vmatprep.subr.mxu0 0.0
        %1678 = vmatpush1.msra.mxu0 0.0
        %1679 = vmatprep.mubr.f32.mxu0 0.0
        %v1680 = vand.u32 %v1583, 4294901760
        %v1681 = vsub.f32 %v1583, %v1680
        %v1682 = vand.u32 %v1681, 4294901760
        %v1683 = vsub.f32 %v1681, %v1682
        %v1684 = vand.u32 %v1683, 4294901760
        %1685 = vmatmul.mubr.f32.gmra.mrb[0].mxu0 %v1684
        %v1686 = vpop.f32.mrb[0].mxu0
        %v1687 = vadd.f32 0.0, %v1686
        %v1688 = vpop.f32.mrb[0].mxu0
        %1689 = vmatprep.mubr.f32.mxu0 0.0
        %v1690 = vand.u32 %v1584, 4294901760
        %v1691 = vsub.f32 %v1584, %v1690
        %v1692 = vand.u32 %v1691, 4294901760
        %v1693 = vsub.f32 %v1691, %v1692
        %v1694 = vand.u32 %v1693, 4294901760
        %1695 = vmatmul.mubr.f32.gmra.mrb[0].mxu0 %v1694
        %v1696 = vpop.f32.mrb[0].mxu0
        %v1697 = vadd.f32 0.0, %v1696
        %v1698 = vpop.f32.mrb[0].mxu0
        %1699 = vmatprep.mubr.f32.mxu0 0.0
        %v1700 = vand.u32 %v1585, 4294901760
        %v1701 = vsub.f32 %v1585, %v1700
        %v1702 = vand.u32 %v1701, 4294901760
        %v1703 = vsub.f32 %v1701, %v1702
        %v1704 = vand.u32 %v1703, 4294901760
        %1705 = vmatmul.mubr.f32.gmra.mrb[0].mxu0 %v1704
        %v1706 = vpop.f32.mrb[0].mxu0
        %v1707 = vadd.f32 0.0, %v1706
        %v1708 = vpop.f32.mrb[0].mxu0
        %1709 = vmatprep.mubr.f32.mxu0 0.0
        %v1710 = vand.u32 %v1586, 4294901760
        %v1711 = vsub.f32 %v1586, %v1710
        %v1712 = vand.u32 %v1711, 4294901760
        %v1713 = vsub.f32 %v1711, %v1712
        %v1714 = vand.u32 %v1713, 4294901760
        %1715 = vmatmul.mubr.f32.gmra.mrb[0].mxu0 %v1714
        %v1716 = vpop.f32.mrb[0].mxu0
        %v1717 = vadd.f32 0.0, %v1716
        %v1718 = vpop.f32.mrb[0].mxu0
        %1719 = vmatprep.mubr.f32.mxu0 0.0
        %v1720 = vand.u32 %v1587, 4294901760
        %v1721 = vsub.f32 %v1587, %v1720
        %v1722 = vand.u32 %v1721, 4294901760
        %v1723 = vsub.f32 %v1721, %v1722
        %v1724 = vand.u32 %v1723, 4294901760
        %1725 = vmatmul.mubr.f32.gmra.mrb[0].mxu0 %v1724
        %v1726 = vpop.f32.mrb[0].mxu0
        %v1727 = vadd.f32 0.0, %v1726
        %v1728 = vpop.f32.mrb[0].mxu0
        %1729 = vmatprep.mubr.f32.mxu0 0.0
        %v1730 = vand.u32 %v1588, 4294901760
        %v1731 = vsub.f32 %v1588, %v1730
        %v1732 = vand.u32 %v1731, 4294901760
        %v1733 = vsub.f32 %v1731, %v1732
        %v1734 = vand.u32 %v1733, 4294901760
        %1735 = vmatmul.mubr.f32.gmra.mrb[0].mxu0 %v1734
        %v1736 = vpop.f32.mrb[0].mxu0
        %v1737 = vadd.f32 0.0, %v1736
        %v1738 = vpop.f32.mrb[0].mxu0
        %1739 = vmatprep.mubr.f32.mxu0 0.0
        %v1740 = vand.u32 %v1589, 4294901760
        %v1741 = vsub.f32 %v1589, %v1740
        %v1742 = vand.u32 %v1741, 4294901760
        %v1743 = vsub.f32 %v1741, %v1742
        %v1744 = vand.u32 %v1743, 4294901760
        %1745 = vmatmul.mubr.f32.gmra.mrb[0].mxu0 %v1744
        %v1746 = vpop.f32.mrb[0].mxu0
        %v1747 = vadd.f32 0.0, %v1746
        %v1748 = vpop.f32.mrb[0].mxu0
        %1749 = vmatprep.mubr.f32.mxu0 0.0
        %v1750 = vand.u32 %v1590, 4294901760
        %v1751 = vsub.f32 %v1590, %v1750
        %v1752 = vand.u32 %v1751, 4294901760
        %v1753 = vsub.f32 %v1751, %v1752
        %v1754 = vand.u32 %v1753, 4294901760
        %1755 = vmatmul.mubr.f32.gmra.mrb[0].mxu0 %v1754
        %v1756 = vpop.f32.mrb[0].mxu0
        %v1757 = vadd.f32 0.0, %v1756
        %v1758 = vpop.f32.mrb[0].mxu0
        %1759 = vmatprep.mubr.f32.mxu0 0.0
        %v1760 = vand.u32 %v1591, 4294901760
        %v1761 = vsub.f32 %v1591, %v1760
        %v1762 = vand.u32 %v1761, 4294901760
        %v1763 = vsub.f32 %v1761, %v1762
        %v1764 = vand.u32 %v1763, 4294901760
        %1765 = vmatmul.mubr.f32.gmra.mrb[0].mxu0 %v1764
        %v1766 = vpop.f32.mrb[0].mxu0
        %v1767 = vadd.f32 0.0, %v1766
        %v1768 = vpop.f32.mrb[0].mxu0
        %1769 = vmatprep.mubr.f32.mxu0 0.0
        %v1770 = vand.u32 %v1592, 4294901760
        %v1771 = vsub.f32 %v1592, %v1770
        %v1772 = vand.u32 %v1771, 4294901760
        %v1773 = vsub.f32 %v1771, %v1772
        %v1774 = vand.u32 %v1773, 4294901760
        %1775 = vmatmul.mubr.f32.gmra.mrb[0].mxu0 %v1774
        %v1776 = vpop.f32.mrb[0].mxu0
        %v1777 = vadd.f32 0.0, %v1776
        %v1778 = vpop.f32.mrb[0].mxu0
        %1779 = vmatprep.mubr.f32.mxu0 0.0
        %v1780 = vand.u32 %v1593, 4294901760
        %v1781 = vsub.f32 %v1593, %v1780
        %v1782 = vand.u32 %v1781, 4294901760
        %v1783 = vsub.f32 %v1781, %v1782
        %v1784 = vand.u32 %v1783, 4294901760
        %1785 = vmatmul.mubr.f32.gmra.mrb[0].mxu0 %v1784
        %v1786 = vpop.f32.mrb[0].mxu0
        %v1787 = vadd.f32 0.0, %v1786
        %v1788 = vpop.f32.mrb[0].mxu0
        %1789 = vmatprep.mubr.f32.mxu0 0.0
        %v1790 = vand.u32 %v1594, 4294901760
        %v1791 = vsub.f32 %v1594, %v1790
        %v1792 = vand.u32 %v1791, 4294901760
        %v1793 = vsub.f32 %v1791, %v1792
        %v1794 = vand.u32 %v1793, 4294901760
        %1795 = vmatmul.mubr.f32.gmra.mrb[0].mxu0 %v1794
        %v1796 = vpop.f32.mrb[0].mxu0
        %v1797 = vadd.f32 0.0, %v1796
        %v1798 = vpop.f32.mrb[0].mxu0
        %1799 = vmatprep.mubr.f32.mxu0 0.0
        %v1800 = vand.u32 %v1595, 4294901760
        %v1801 = vsub.f32 %v1595, %v1800
        %v1802 = vand.u32 %v1801, 4294901760
        %v1803 = vsub.f32 %v1801, %v1802
        %v1804 = vand.u32 %v1803, 4294901760
        %1805 = vmatmul.mubr.f32.gmra.mrb[0].mxu0 %v1804
        %v1806 = vpop.f32.mrb[0].mxu0
        %v1807 = vadd.f32 0.0, %v1806
        %v1808 = vpop.f32.mrb[0].mxu0
        %1809 = vmatprep.mubr.f32.mxu0 0.0
        %v1810 = vand.u32 %v1596, 4294901760
        %v1811 = vsub.f32 %v1596, %v1810
        %v1812 = vand.u32 %v1811, 4294901760
        %v1813 = vsub.f32 %v1811, %v1812
        %v1814 = vand.u32 %v1813, 4294901760
        %1815 = vmatmul.mubr.f32.gmra.mrb[0].mxu0 %v1814
        %v1816 = vpop.f32.mrb[0].mxu0
        %v1817 = vadd.f32 0.0, %v1816
        %v1818 = vpop.f32.mrb[0].mxu0
        %1819 = vmatprep.mubr.f32.mxu0 0.0
        %v1820 = vand.u32 %v1597, 4294901760
        %v1821 = vsub.f32 %v1597, %v1820
        %v1822 = vand.u32 %v1821, 4294901760
        %v1823 = vsub.f32 %v1821, %v1822
        %v1824 = vand.u32 %v1823, 4294901760
        %1825 = vmatmul.mubr.f32.gmra.mrb[0].mxu0 %v1824
        %v1826 = vpop.f32.mrb[0].mxu0
        %v1827 = vadd.f32 0.0, %v1826
        %v1828 = vpop.f32.mrb[0].mxu0
        %1829 = vmatprep.mubr.f32.mxu0 0.0
        %v1830 = vand.u32 %v1598, 4294901760
        %v1831 = vsub.f32 %v1598, %v1830
        %v1832 = vand.u32 %v1831, 4294901760
        %v1833 = vsub.f32 %v1831, %v1832
        %v1834 = vand.u32 %v1833, 4294901760
        %1835 = vmatmul.mubr.f32.gmra.mrb[0].mxu0 %v1834
        %v1836 = vpop.f32.mrb[0].mxu0
        %v1837 = vadd.f32 0.0, %v1836
        %v1838 = vpop.f32.mrb[0].mxu0
        %1839 = vdwg.mxu0
        %1840 = vmatprep.subr.mxu0 0.0
        %v1841 = vand.u32 %v249, 4294901760
        %v1842 = vsub.f32 %v249, %v1841
        %v1843 = vand.u32 %v1842, 4294901760
        %v1844 = vsub.f32 %v1842, %v1843
        %v1845 = vand.u32 %v1844, 4294901760
        %1846 = vmatpush1.msra.mxu0 %v1845
        %1847 = vmatprep.subr.mxu0 0.0
        %v1848 = vand.u32 %v250, 4294901760
        %v1849 = vsub.f32 %v250, %v1848
        %v1850 = vand.u32 %v1849, 4294901760
        %v1851 = vsub.f32 %v1849, %v1850
        %v1852 = vand.u32 %v1851, 4294901760
        %1853 = vmatpush1.msra.mxu0 %v1852
        %1854 = vmatprep.subr.mxu0 0.0
        %v1855 = vand.u32 %v251, 4294901760
        %v1856 = vsub.f32 %v251, %v1855
        %v1857 = vand.u32 %v1856, 4294901760
        %v1858 = vsub.f32 %v1856, %v1857
        %v1859 = vand.u32 %v1858, 4294901760
        %1860 = vmatpush1.msra.mxu0 %v1859
        %1861 = vmatprep.subr.mxu0 0.0
        %v1862 = vand.u32 %v252, 4294901760
        %v1863 = vsub.f32 %v252, %v1862
        %v1864 = vand.u32 %v1863, 4294901760
        %v1865 = vsub.f32 %v1863, %v1864
        %v1866 = vand.u32 %v1865, 4294901760
        %1867 = vmatpush1.msra.mxu0 %v1866
        %1868 = vmatprep.subr.mxu0 0.0
        %v1869 = vand.u32 %v253, 4294901760
        %v1870 = vsub.f32 %v253, %v1869
        %v1871 = vand.u32 %v1870, 4294901760
        %v1872 = vsub.f32 %v1870, %v1871
        %v1873 = vand.u32 %v1872, 4294901760
        %1874 = vmatpush1.msra.mxu0 %v1873
        %1875 = vmatprep.subr.mxu0 0.0
        %v1876 = vand.u32 %v254, 4294901760
        %v1877 = vsub.f32 %v254, %v1876
        %v1878 = vand.u32 %v1877, 4294901760
        %v1879 = vsub.f32 %v1877, %v1878
        %v1880 = vand.u32 %v1879, 4294901760
        %1881 = vmatpush1.msra.mxu0 %v1880
        %1882 = vmatprep.subr.mxu0 0.0
        %v1883 = vand.u32 %v255, 4294901760
        %v1884 = vsub.f32 %v255, %v1883
        %v1885 = vand.u32 %v1884, 4294901760
        %v1886 = vsub.f32 %v1884, %v1885
        %v1887 = vand.u32 %v1886, 4294901760
        %1888 = vmatpush1.msra.mxu0 %v1887
        %1889 = vmatprep.subr.mxu0 0.0
        %v1890 = vand.u32 %v256, 4294901760
        %v1891 = vsub.f32 %v256, %v1890
        %v1892 = vand.u32 %v1891, 4294901760
        %v1893 = vsub.f32 %v1891, %v1892
        %v1894 = vand.u32 %v1893, 4294901760
        %1895 = vmatpush1.msra.mxu0 %v1894
        %1896 = vmatprep.subr.mxu0 0.0
        %v1897 = vand.u32 %v257, 4294901760
        %v1898 = vsub.f32 %v257, %v1897
        %v1899 = vand.u32 %v1898, 4294901760
        %v1900 = vsub.f32 %v1898, %v1899
        %v1901 = vand.u32 %v1900, 4294901760
        %1902 = vmatpush1.msra.mxu0 %v1901
        %1903 = vmatprep.subr.mxu0 0.0
        %v1904 = vand.u32 %v258, 4294901760
        %v1905 = vsub.f32 %v258, %v1904
        %v1906 = vand.u32 %v1905, 4294901760
        %v1907 = vsub.f32 %v1905, %v1906
        %v1908 = vand.u32 %v1907, 4294901760
        %1909 = vmatpush1.msra.mxu0 %v1908
        %1910 = vmatprep.subr.mxu0 0.0
        %v1911 = vand.u32 %v259, 4294901760
        %v1912 = vsub.f32 %v259, %v1911
        %v1913 = vand.u32 %v1912, 4294901760
        %v1914 = vsub.f32 %v1912, %v1913
        %v1915 = vand.u32 %v1914, 4294901760
        %1916 = vmatpush1.msra.mxu0 %v1915
        %1917 = vmatprep.subr.mxu0 0.0
        %v1918 = vand.u32 %v260, 4294901760
        %v1919 = vsub.f32 %v260, %v1918
        %v1920 = vand.u32 %v1919, 4294901760
        %v1921 = vsub.f32 %v1919, %v1920
        %v1922 = vand.u32 %v1921, 4294901760
        %1923 = vmatpush1.msra.mxu0 %v1922
        %1924 = vmatprep.subr.mxu0 0.0
        %v1925 = vand.u32 %v261, 4294901760
        %v1926 = vsub.f32 %v261, %v1925
        %v1927 = vand.u32 %v1926, 4294901760
        %v1928 = vsub.f32 %v1926, %v1927
        %v1929 = vand.u32 %v1928, 4294901760
        %1930 = vmatpush1.msra.mxu0 %v1929
        %1931 = vmatprep.subr.mxu0 0.0
        %v1932 = vand.u32 %v262, 4294901760
        %v1933 = vsub.f32 %v262, %v1932
        %v1934 = vand.u32 %v1933, 4294901760
        %v1935 = vsub.f32 %v1933, %v1934
        %v1936 = vand.u32 %v1935, 4294901760
        %1937 = vmatpush1.msra.mxu0 %v1936
        %1938 = vmatprep.subr.mxu0 0.0
        %v1939 = vand.u32 %v263, 4294901760
        %v1940 = vsub.f32 %v263, %v1939
        %v1941 = vand.u32 %v1940, 4294901760
        %v1942 = vsub.f32 %v1940, %v1941
        %v1943 = vand.u32 %v1942, 4294901760
        %1944 = vmatpush1.msra.mxu0 %v1943
        %1945 = vmatprep.subr.mxu0 0.0
        %v1946 = vand.u32 %v264, 4294901760
        %v1947 = vsub.f32 %v264, %v1946
        %v1948 = vand.u32 %v1947, 4294901760
        %v1949 = vsub.f32 %v1947, %v1948
        %v1950 = vand.u32 %v1949, 4294901760
        %1951 = vmatpush1.msra.mxu0 %v1950
        %1952 = vmatprep.subr.mxu0 0.0
        %1953 = vmatpush1.msra.mxu0 0.0
        %1954 = vmatprep.subr.mxu0 0.0
        %1955 = vmatpush1.msra.mxu0 0.0
        %1956 = vmatprep.subr.mxu0 0.0
        %1957 = vmatpush1.msra.mxu0 0.0
        %1958 = vmatprep.subr.mxu0 0.0
        %1959 = vmatpush1.msra.mxu0 0.0
        %1960 = vmatprep.subr.mxu0 0.0
        %1961 = vmatpush1.msra.mxu0 0.0
        %1962 = vmatprep.subr.mxu0 0.0
        %1963 = vmatpush1.msra.mxu0 0.0
        %1964 = vmatprep.subr.mxu0 0.0
        %1965 = vmatpush1.msra.mxu0 0.0
        %1966 = vmatprep.subr.mxu0 0.0
        %1967 = vmatpush1.msra.mxu0 0.0
        %1968 = vmatprep.subr.mxu0 0.0
        %1969 = vmatpush1.msra.mxu0 0.0
        %1970 = vmatprep.subr.mxu0 0.0
        %1971 = vmatpush1.msra.mxu0 0.0
        %1972 = vmatprep.subr.mxu0 0.0
        %1973 = vmatpush1.msra.mxu0 0.0
        %1974 = vmatprep.subr.mxu0 0.0
        %1975 = vmatpush1.msra.mxu0 0.0
        %1976 = vmatprep.subr.mxu0 0.0
        %1977 = vmatpush1.msra.mxu0 0.0
        %1978 = vmatprep.subr.mxu0 0.0
        %1979 = vmatpush1.msra.mxu0 0.0
        %1980 = vmatprep.subr.mxu0 0.0
        %1981 = vmatpush1.msra.mxu0 0.0
        %1982 = vmatprep.subr.mxu0 0.0
        %1983 = vmatpush1.msra.mxu0 0.0
        %1984 = vmatprep.mubr.f32.mxu0 0.0
        %v1985 = vand.u32 %v1583, 4294901760
        %1986 = vmatmul.mubr.f32.gmra.mrb[0].mxu0 %v1985
        %v1987 = vpop.f32.mrb[0].mxu0
        %v1988 = vadd.f32 %v1687, %v1987
        %v1989 = vpop.f32.mrb[0].mxu0
        %1990 = vmatprep.mubr.f32.mxu0 0.0
        %v1991 = vand.u32 %v1584, 4294901760
        %1992 = vmatmul.mubr.f32.gmra.mrb[0].mxu0 %v1991
        %v1993 = vpop.f32.mrb[0].mxu0
        %v1994 = vadd.f32 %v1697, %v1993
        %v1995 = vpop.f32.mrb[0].mxu0
        %1996 = vmatprep.mubr.f32.mxu0 0.0
        %v1997 = vand.u32 %v1585, 4294901760
        %1998 = vmatmul.mubr.f32.gmra.mrb[0].mxu0 %v1997
        %v1999 = vpop.f32.mrb[0].mxu0
        %v2000 = vadd.f32 %v1707, %v1999
        %v2001 = vpop.f32.mrb[0].mxu0
        %2002 = vmatprep.mubr.f32.mxu0 0.0
        %v2003 = vand.u32 %v1586, 4294901760
        %2004 = vmatmul.mubr.f32.gmra.mrb[0].mxu0 %v2003
        %v2005 = vpop.f32.mrb[0].mxu0
        %v2006 = vadd.f32 %v1717, %v2005
        %v2007 = vpop.f32.mrb[0].mxu0
        %2008 = vmatprep.mubr.f32.mxu0 0.0
        %v2009 = vand.u32 %v1587, 4294901760
        %2010 = vmatmul.mubr.f32.gmra.mrb[0].mxu0 %v2009
        %v2011 = vpop.f32.mrb[0].mxu0
        %v2012 = vadd.f32 %v1727, %v2011
        %v2013 = vpop.f32.mrb[0].mxu0
        %2014 = vmatprep.mubr.f32.mxu0 0.0
        %v2015 = vand.u32 %v1588, 4294901760
        %2016 = vmatmul.mubr.f32.gmra.mrb[0].mxu0 %v2015
        %v2017 = vpop.f32.mrb[0].mxu0
        %v2018 = vadd.f32 %v1737, %v2017
        %v2019 = vpop.f32.mrb[0].mxu0
        %2020 = vmatprep.mubr.f32.mxu0 0.0
        %v2021 = vand.u32 %v1589, 4294901760
        %2022 = vmatmul.mubr.f32.gmra.mrb[0].mxu0 %v2021
        %v2023 = vpop.f32.mrb[0].mxu0
        %v2024 = vadd.f32 %v1747, %v2023
        %v2025 = vpop.f32.mrb[0].mxu0
        %2026 = vmatprep.mubr.f32.mxu0 0.0
        %v2027 = vand.u32 %v1590, 4294901760
        %2028 = vmatmul.mubr.f32.gmra.mrb[0].mxu0 %v2027
        %v2029 = vpop.f32.mrb[0].mxu0
        %v2030 = vadd.f32 %v1757, %v2029
        %v2031 = vpop.f32.mrb[0].mxu0
        %2032 = vmatprep.mubr.f32.mxu0 0.0
        %v2033 = vand.u32 %v1591, 4294901760
        %2034 = vmatmul.mubr.f32.gmra.mrb[0].mxu0 %v2033
        %v2035 = vpop.f32.mrb[0].mxu0
        %v2036 = vadd.f32 %v1767, %v2035
        %v2037 = vpop.f32.mrb[0].mxu0
        %2038 = vmatprep.mubr.f32.mxu0 0.0
        %v2039 = vand.u32 %v1592, 4294901760
        %2040 = vmatmul.mubr.f32.gmra.mrb[0].mxu0 %v2039
        %v2041 = vpop.f32.mrb[0].mxu0
        %v2042 = vadd.f32 %v1777, %v2041
        %v2043 = vpop.f32.mrb[0].mxu0
        %2044 = vmatprep.mubr.f32.mxu0 0.0
        %v2045 = vand.u32 %v1593, 4294901760
        %2046 = vmatmul.mubr.f32.gmra.mrb[0].mxu0 %v2045
        %v2047 = vpop.f32.mrb[0].mxu0
        %v2048 = vadd.f32 %v1787, %v2047
        %v2049 = vpop.f32.mrb[0].mxu0
        %2050 = vmatprep.mubr.f32.mxu0 0.0
        %v2051 = vand.u32 %v1594, 4294901760
        %2052 = vmatmul.mubr.f32.gmra.mrb[0].mxu0 %v2051
        %v2053 = vpop.f32.mrb[0].mxu0
        %v2054 = vadd.f32 %v1797, %v2053
        %v2055 = vpop.f32.mrb[0].mxu0
        %2056 = vmatprep.mubr.f32.mxu0 0.0
        %v2057 = vand.u32 %v1595, 4294901760
        %2058 = vmatmul.mubr.f32.gmra.mrb[0].mxu0 %v2057
        %v2059 = vpop.f32.mrb[0].mxu0
        %v2060 = vadd.f32 %v1807, %v2059
        %v2061 = vpop.f32.mrb[0].mxu0
        %2062 = vmatprep.mubr.f32.mxu0 0.0
        %v2063 = vand.u32 %v1596, 4294901760
        %2064 = vmatmul.mubr.f32.gmra.mrb[0].mxu0 %v2063
        %v2065 = vpop.f32.mrb[0].mxu0
        %v2066 = vadd.f32 %v1817, %v2065
        %v2067 = vpop.f32.mrb[0].mxu0
        %2068 = vmatprep.mubr.f32.mxu0 0.0
        %v2069 = vand.u32 %v1597, 4294901760
        %2070 = vmatmul.mubr.f32.gmra.mrb[0].mxu0 %v2069
        %v2071 = vpop.f32.mrb[0].mxu0
        %v2072 = vadd.f32 %v1827, %v2071
        %v2073 = vpop.f32.mrb[0].mxu0
        %2074 = vmatprep.mubr.f32.mxu0 0.0
        %v2075 = vand.u32 %v1598, 4294901760
        %2076 = vmatmul.mubr.f32.gmra.mrb[0].mxu0 %v2075
        %v2077 = vpop.f32.mrb[0].mxu0
        %v2078 = vadd.f32 %v1837, %v2077
        %v2079 = vpop.f32.mrb[0].mxu0
        %2080 = vdwg.mxu0
        %2081 = vmatprep.subr.mxu0 0.0
        %v2082 = vand.u32 %v249, 4294901760
        %v2083 = vsub.f32 %v249, %v2082
        %2084 = vmatpush1.msra.mxu0 %v2083
        %2085 = vmatprep.subr.mxu0 0.0
        %v2086 = vand.u32 %v250, 4294901760
        %v2087 = vsub.f32 %v250, %v2086
        %2088 = vmatpush1.msra.mxu0 %v2087
        %2089 = vmatprep.subr.mxu0 0.0
        %v2090 = vand.u32 %v251, 4294901760
        %v2091 = vsub.f32 %v251, %v2090
        %2092 = vmatpush1.msra.mxu0 %v2091
        %2093 = vmatprep.subr.mxu0 0.0
        %v2094 = vand.u32 %v252, 4294901760
        %v2095 = vsub.f32 %v252, %v2094
        %2096 = vmatpush1.msra.mxu0 %v2095
        %2097 = vmatprep.subr.mxu0 0.0
        %v2098 = vand.u32 %v253, 4294901760
        %v2099 = vsub.f32 %v253, %v2098
        %2100 = vmatpush1.msra.mxu0 %v2099
        %2101 = vmatprep.subr.mxu0 0.0
        %v2102 = vand.u32 %v254, 4294901760
        %v2103 = vsub.f32 %v254, %v2102
        %2104 = vmatpush1.msra.mxu0 %v2103
        %2105 = vmatprep.subr.mxu0 0.0
        %v2106 = vand.u32 %v255, 4294901760
        %v2107 = vsub.f32 %v255, %v2106
        %2108 = vmatpush1.msra.mxu0 %v2107
        %2109 = vmatprep.subr.mxu0 0.0
        %v2110 = vand.u32 %v256, 4294901760
        %v2111 = vsub.f32 %v256, %v2110
        %2112 = vmatpush1.msra.mxu0 %v2111
        %2113 = vmatprep.subr.mxu0 0.0
        %v2114 = vand.u32 %v257, 4294901760
        %v2115 = vsub.f32 %v257, %v2114
        %2116 = vmatpush1.msra.mxu0 %v2115
        %2117 = vmatprep.subr.mxu0 0.0
        %v2118 = vand.u32 %v258, 4294901760
        %v2119 = vsub.f32 %v258, %v2118
        %2120 = vmatpush1.msra.mxu0 %v2119
        %2121 = vmatprep.subr.mxu0 0.0
        %v2122 = vand.u32 %v259, 4294901760
        %v2123 = vsub.f32 %v259, %v2122
        %2124 = vmatpush1.msra.mxu0 %v2123
        %2125 = vmatprep.subr.mxu0 0.0
        %v2126 = vand.u32 %v260, 4294901760
        %v2127 = vsub.f32 %v260, %v2126
        %2128 = vmatpush1.msra.mxu0 %v2127
        %2129 = vmatprep.subr.mxu0 0.0
        %v2130 = vand.u32 %v261, 4294901760
        %v2131 = vsub.f32 %v261, %v2130
        %2132 = vmatpush1.msra.mxu0 %v2131
        %2133 = vmatprep.subr.mxu0 0.0
        %v2134 = vand.u32 %v262, 4294901760
        %v2135 = vsub.f32 %v262, %v2134
        %2136 = vmatpush1.msra.mxu0 %v2135
        %2137 = vmatprep.subr.mxu0 0.0
        %v2138 = vand.u32 %v263, 4294901760
        %v2139 = vsub.f32 %v263, %v2138
        %2140 = vmatpush1.msra.mxu0 %v2139
        %2141 = vmatprep.subr.mxu0 0.0
        %v2142 = vand.u32 %v264, 4294901760
        %v2143 = vsub.f32 %v264, %v2142
        %2144 = vmatpush1.msra.mxu0 %v2143
        %2145 = vmatprep.subr.mxu0 0.0
        %2146 = vmatpush1.msra.mxu0 0.0
        %2147 = vmatprep.subr.mxu0 0.0
        %2148 = vmatpush1.msra.mxu0 0.0
        %2149 = vmatprep.subr.mxu0 0.0
        %2150 = vmatpush1.msra.mxu0 0.0
        %2151 = vmatprep.subr.mxu0 0.0
        %2152 = vmatpush1.msra.mxu0 0.0
        %2153 = vmatprep.subr.mxu0 0.0
        %2154 = vmatpush1.msra.mxu0 0.0
        %2155 = vmatprep.subr.mxu0 0.0
        %2156 = vmatpush1.msra.mxu0 0.0
        %2157 = vmatprep.subr.mxu0 0.0
        %2158 = vmatpush1.msra.mxu0 0.0
        %2159 = vmatprep.subr.mxu0 0.0
        %2160 = vmatpush1.msra.mxu0 0.0
        %2161 = vmatprep.subr.mxu0 0.0
        %2162 = vmatpush1.msra.mxu0 0.0
        %2163 = vmatprep.subr.mxu0 0.0
        %2164 = vmatpush1.msra.mxu0 0.0
        %2165 = vmatprep.subr.mxu0 0.0
        %2166 = vmatpush1.msra.mxu0 0.0
        %2167 = vmatprep.subr.mxu0 0.0
        %2168 = vmatpush1.msra.mxu0 0.0
        %2169 = vmatprep.subr.mxu0 0.0
        %2170 = vmatpush1.msra.mxu0 0.0
        %2171 = vmatprep.subr.mxu0 0.0
        %2172 = vmatpush1.msra.mxu0 0.0
        %2173 = vmatprep.subr.mxu0 0.0
        %2174 = vmatpush1.msra.mxu0 0.0
        %2175 = vmatprep.subr.mxu0 0.0
        %2176 = vmatpush1.msra.mxu0 0.0
        %2177 = vmatprep.mubr.f32.mxu0 0.0
        %v2178 = vand.u32 %v1583, 4294901760
        %v2179 = vsub.f32 %v1583, %v2178
        %2180 = vmatmul.mubr.f32.gmra.mrb[0].mxu0 %v2179
        %v2181 = vpop.f32.mrb[0].mxu0
        %v2182 = vadd.f32 %v1988, %v2181
        %v2183 = vpop.f32.mrb[0].mxu0
        %2184 = vmatprep.mubr.f32.mxu0 0.0
        %v2185 = vand.u32 %v1584, 4294901760
        %v2186 = vsub.f32 %v1584, %v2185
        %2187 = vmatmul.mubr.f32.gmra.mrb[0].mxu0 %v2186
        %v2188 = vpop.f32.mrb[0].mxu0
        %v2189 = vadd.f32 %v1994, %v2188
        %v2190 = vpop.f32.mrb[0].mxu0
        %2191 = vmatprep.mubr.f32.mxu0 0.0
        %v2192 = vand.u32 %v1585, 4294901760
        %v2193 = vsub.f32 %v1585, %v2192
        %2194 = vmatmul.mubr.f32.gmra.mrb[0].mxu0 %v2193
        %v2195 = vpop.f32.mrb[0].mxu0
        %v2196 = vadd.f32 %v2000, %v2195
        %v2197 = vpop.f32.mrb[0].mxu0
        %2198 = vmatprep.mubr.f32.mxu0 0.0
        %v2199 = vand.u32 %v1586, 4294901760
        %v2200 = vsub.f32 %v1586, %v2199
        %2201 = vmatmul.mubr.f32.gmra.mrb[0].mxu0 %v2200
        %v2202 = vpop.f32.mrb[0].mxu0
        %v2203 = vadd.f32 %v2006, %v2202
        %v2204 = vpop.f32.mrb[0].mxu0
        %2205 = vmatprep.mubr.f32.mxu0 0.0
        %v2206 = vand.u32 %v1587, 4294901760
        %v2207 = vsub.f32 %v1587, %v2206
        %2208 = vmatmul.mubr.f32.gmra.mrb[0].mxu0 %v2207
        %v2209 = vpop.f32.mrb[0].mxu0
        %v2210 = vadd.f32 %v2012, %v2209
        %v2211 = vpop.f32.mrb[0].mxu0
        %2212 = vmatprep.mubr.f32.mxu0 0.0
        %v2213 = vand.u32 %v1588, 4294901760
        %v2214 = vsub.f32 %v1588, %v2213
        %2215 = vmatmul.mubr.f32.gmra.mrb[0].mxu0 %v2214
        %v2216 = vpop.f32.mrb[0].mxu0
        %v2217 = vadd.f32 %v2018, %v2216
        %v2218 = vpop.f32.mrb[0].mxu0
        %2219 = vmatprep.mubr.f32.mxu0 0.0
        %v2220 = vand.u32 %v1589, 4294901760
        %v2221 = vsub.f32 %v1589, %v2220
        %2222 = vmatmul.mubr.f32.gmra.mrb[0].mxu0 %v2221
        %v2223 = vpop.f32.mrb[0].mxu0
        %v2224 = vadd.f32 %v2024, %v2223
        %v2225 = vpop.f32.mrb[0].mxu0
        %2226 = vmatprep.mubr.f32.mxu0 0.0
        %v2227 = vand.u32 %v1590, 4294901760
        %v2228 = vsub.f32 %v1590, %v2227
        %2229 = vmatmul.mubr.f32.gmra.mrb[0].mxu0 %v2228
        %v2230 = vpop.f32.mrb[0].mxu0
        %v2231 = vadd.f32 %v2030, %v2230
        %v2232 = vpop.f32.mrb[0].mxu0
        %2233 = vmatprep.mubr.f32.mxu0 0.0
        %v2234 = vand.u32 %v1591, 4294901760
        %v2235 = vsub.f32 %v1591, %v2234
        %2236 = vmatmul.mubr.f32.gmra.mrb[0].mxu0 %v2235
        %v2237 = vpop.f32.mrb[0].mxu0
        %v2238 = vadd.f32 %v2036, %v2237
        %v2239 = vpop.f32.mrb[0].mxu0
        %2240 = vmatprep.mubr.f32.mxu0 0.0
        %v2241 = vand.u32 %v1592, 4294901760
        %v2242 = vsub.f32 %v1592, %v2241
        %2243 = vmatmul.mubr.f32.gmra.mrb[0].mxu0 %v2242
        %v2244 = vpop.f32.mrb[0].mxu0
        %v2245 = vadd.f32 %v2042, %v2244
        %v2246 = vpop.f32.mrb[0].mxu0
        %2247 = vmatprep.mubr.f32.mxu0 0.0
        %v2248 = vand.u32 %v1593, 4294901760
        %v2249 = vsub.f32 %v1593, %v2248
        %2250 = vmatmul.mubr.f32.gmra.mrb[0].mxu0 %v2249
        %v2251 = vpop.f32.mrb[0].mxu0
        %v2252 = vadd.f32 %v2048, %v2251
        %v2253 = vpop.f32.mrb[0].mxu0
        %2254 = vmatprep.mubr.f32.mxu0 0.0
        %v2255 = vand.u32 %v1594, 4294901760
        %v2256 = vsub.f32 %v1594, %v2255
        %2257 = vmatmul.mubr.f32.gmra.mrb[0].mxu0 %v2256
        %v2258 = vpop.f32.mrb[0].mxu0
        %v2259 = vadd.f32 %v2054, %v2258
        %v2260 = vpop.f32.mrb[0].mxu0
        %2261 = vmatprep.mubr.f32.mxu0 0.0
        %v2262 = vand.u32 %v1595, 4294901760
        %v2263 = vsub.f32 %v1595, %v2262
        %2264 = vmatmul.mubr.f32.gmra.mrb[0].mxu0 %v2263
        %v2265 = vpop.f32.mrb[0].mxu0
        %v2266 = vadd.f32 %v2060, %v2265
        %v2267 = vpop.f32.mrb[0].mxu0
        %2268 = vmatprep.mubr.f32.mxu0 0.0
        %v2269 = vand.u32 %v1596, 4294901760
        %v2270 = vsub.f32 %v1596, %v2269
        %2271 = vmatmul.mubr.f32.gmra.mrb[0].mxu0 %v2270
        %v2272 = vpop.f32.mrb[0].mxu0
        %v2273 = vadd.f32 %v2066, %v2272
        %v2274 = vpop.f32.mrb[0].mxu0
        %2275 = vmatprep.mubr.f32.mxu0 0.0
        %v2276 = vand.u32 %v1597, 4294901760
        %v2277 = vsub.f32 %v1597, %v2276
        %2278 = vmatmul.mubr.f32.gmra.mrb[0].mxu0 %v2277
        %v2279 = vpop.f32.mrb[0].mxu0
        %v2280 = vadd.f32 %v2072, %v2279
        %v2281 = vpop.f32.mrb[0].mxu0
        %2282 = vmatprep.mubr.f32.mxu0 0.0
        %v2283 = vand.u32 %v1598, 4294901760
        %v2284 = vsub.f32 %v1598, %v2283
        %2285 = vmatmul.mubr.f32.gmra.mrb[0].mxu0 %v2284
        %v2286 = vpop.f32.mrb[0].mxu0
        %v2287 = vadd.f32 %v2078, %v2286
        %v2288 = vpop.f32.mrb[0].mxu0
        %2289 = vdwg.mxu0
        %2290 = vmatprep.subr.mxu0 0.0
        %v2291 = vand.u32 %v249, 4294901760
        %2292 = vmatpush1.msra.mxu0 %v2291
        %2293 = vmatprep.subr.mxu0 0.0
        %v2294 = vand.u32 %v250, 4294901760
        %2295 = vmatpush1.msra.mxu0 %v2294
        %2296 = vmatprep.subr.mxu0 0.0
        %v2297 = vand.u32 %v251, 4294901760
        %2298 = vmatpush1.msra.mxu0 %v2297
        %2299 = vmatprep.subr.mxu0 0.0
        %v2300 = vand.u32 %v252, 4294901760
        %2301 = vmatpush1.msra.mxu0 %v2300
        %2302 = vmatprep.subr.mxu0 0.0
        %v2303 = vand.u32 %v253, 4294901760
        %2304 = vmatpush1.msra.mxu0 %v2303
        %2305 = vmatprep.subr.mxu0 0.0
        %v2306 = vand.u32 %v254, 4294901760
        %2307 = vmatpush1.msra.mxu0 %v2306
        %2308 = vmatprep.subr.mxu0 0.0
        %v2309 = vand.u32 %v255, 4294901760
        %2310 = vmatpush1.msra.mxu0 %v2309
        %2311 = vmatprep.subr.mxu0 0.0
        %v2312 = vand.u32 %v256, 4294901760
        %2313 = vmatpush1.msra.mxu0 %v2312
        %2314 = vmatprep.subr.mxu0 0.0
        %v2315 = vand.u32 %v257, 4294901760
        %2316 = vmatpush1.msra.mxu0 %v2315
        %2317 = vmatprep.subr.mxu0 0.0
        %v2318 = vand.u32 %v258, 4294901760
        %2319 = vmatpush1.msra.mxu0 %v2318
        %2320 = vmatprep.subr.mxu0 0.0
        %v2321 = vand.u32 %v259, 4294901760
        %2322 = vmatpush1.msra.mxu0 %v2321
        %2323 = vmatprep.subr.mxu0 0.0
        %v2324 = vand.u32 %v260, 4294901760
        %2325 = vmatpush1.msra.mxu0 %v2324
        %2326 = vmatprep.subr.mxu0 0.0
        %v2327 = vand.u32 %v261, 4294901760
        %2328 = vmatpush1.msra.mxu0 %v2327
        %2329 = vmatprep.subr.mxu0 0.0
        %v2330 = vand.u32 %v262, 4294901760
        %2331 = vmatpush1.msra.mxu0 %v2330
        %2332 = vmatprep.subr.mxu0 0.0
        %v2333 = vand.u32 %v263, 4294901760
        %2334 = vmatpush1.msra.mxu0 %v2333
        %2335 = vmatprep.subr.mxu0 0.0
        %v2336 = vand.u32 %v264, 4294901760
        %2337 = vmatpush1.msra.mxu0 %v2336
        %2338 = vmatprep.subr.mxu0 0.0
        %2339 = vmatpush1.msra.mxu0 0.0
        %2340 = vmatprep.subr.mxu0 0.0
        %2341 = vmatpush1.msra.mxu0 0.0
        %2342 = vmatprep.subr.mxu0 0.0
        %2343 = vmatpush1.msra.mxu0 0.0
        %2344 = vmatprep.subr.mxu0 0.0
        %2345 = vmatpush1.msra.mxu0 0.0
        %2346 = vmatprep.subr.mxu0 0.0
        %2347 = vmatpush1.msra.mxu0 0.0
        %2348 = vmatprep.subr.mxu0 0.0
        %2349 = vmatpush1.msra.mxu0 0.0
        %2350 = vmatprep.subr.mxu0 0.0
        %2351 = vmatpush1.msra.mxu0 0.0
        %2352 = vmatprep.subr.mxu0 0.0
        %2353 = vmatpush1.msra.mxu0 0.0
        %2354 = vmatprep.subr.mxu0 0.0
        %2355 = vmatpush1.msra.mxu0 0.0
        %2356 = vmatprep.subr.mxu0 0.0
        %2357 = vmatpush1.msra.mxu0 0.0
        %2358 = vmatprep.subr.mxu0 0.0
        %2359 = vmatpush1.msra.mxu0 0.0
        %2360 = vmatprep.subr.mxu0 0.0
        %2361 = vmatpush1.msra.mxu0 0.0
        %2362 = vmatprep.subr.mxu0 0.0
        %2363 = vmatpush1.msra.mxu0 0.0
        %2364 = vmatprep.subr.mxu0 0.0
        %2365 = vmatpush1.msra.mxu0 0.0
        %2366 = vmatprep.subr.mxu0 0.0
        %2367 = vmatpush1.msra.mxu0 0.0
        %2368 = vmatprep.subr.mxu0 0.0
        %2369 = vmatpush1.msra.mxu0 0.0
        %2370 = vmatprep.mubr.f32.mxu0 0.0
        %v2371 = vand.u32 %v1583, 4294901760
        %v2372 = vsub.f32 %v1583, %v2371
        %v2373 = vand.u32 %v2372, 4294901760
        %2374 = vmatmul.mubr.f32.gmra.mrb[0].mxu0 %v2373
        %v2375 = vpop.f32.mrb[0].mxu0
        %v2376 = vadd.f32 %v2182, %v2375
        %v2377 = vpop.f32.mrb[0].mxu0
        %2378 = vmatprep.mubr.f32.mxu0 0.0
        %v2379 = vand.u32 %v1584, 4294901760
        %v2380 = vsub.f32 %v1584, %v2379
        %v2381 = vand.u32 %v2380, 4294901760
        %2382 = vmatmul.mubr.f32.gmra.mrb[0].mxu0 %v2381
        %v2383 = vpop.f32.mrb[0].mxu0
        %v2384 = vadd.f32 %v2189, %v2383
        %v2385 = vpop.f32.mrb[0].mxu0
        %2386 = vmatprep.mubr.f32.mxu0 0.0
        %v2387 = vand.u32 %v1585, 4294901760
        %v2388 = vsub.f32 %v1585, %v2387
        %v2389 = vand.u32 %v2388, 4294901760
        %2390 = vmatmul.mubr.f32.gmra.mrb[0].mxu0 %v2389
        %v2391 = vpop.f32.mrb[0].mxu0
        %v2392 = vadd.f32 %v2196, %v2391
        %v2393 = vpop.f32.mrb[0].mxu0
        %2394 = vmatprep.mubr.f32.mxu0 0.0
        %v2395 = vand.u32 %v1586, 4294901760
        %v2396 = vsub.f32 %v1586, %v2395
        %v2397 = vand.u32 %v2396, 4294901760
        %2398 = vmatmul.mubr.f32.gmra.mrb[0].mxu0 %v2397
        %v2399 = vpop.f32.mrb[0].mxu0
        %v2400 = vadd.f32 %v2203, %v2399
        %v2401 = vpop.f32.mrb[0].mxu0
        %2402 = vmatprep.mubr.f32.mxu0 0.0
        %v2403 = vand.u32 %v1587, 4294901760
        %v2404 = vsub.f32 %v1587, %v2403
        %v2405 = vand.u32 %v2404, 4294901760
        %2406 = vmatmul.mubr.f32.gmra.mrb[0].mxu0 %v2405
        %v2407 = vpop.f32.mrb[0].mxu0
        %v2408 = vadd.f32 %v2210, %v2407
        %v2409 = vpop.f32.mrb[0].mxu0
        %2410 = vmatprep.mubr.f32.mxu0 0.0
        %v2411 = vand.u32 %v1588, 4294901760
        %v2412 = vsub.f32 %v1588, %v2411
        %v2413 = vand.u32 %v2412, 4294901760
        %2414 = vmatmul.mubr.f32.gmra.mrb[0].mxu0 %v2413
        %v2415 = vpop.f32.mrb[0].mxu0
        %v2416 = vadd.f32 %v2217, %v2415
        %v2417 = vpop.f32.mrb[0].mxu0
        %2418 = vmatprep.mubr.f32.mxu0 0.0
        %v2419 = vand.u32 %v1589, 4294901760
        %v2420 = vsub.f32 %v1589, %v2419
        %v2421 = vand.u32 %v2420, 4294901760
        %2422 = vmatmul.mubr.f32.gmra.mrb[0].mxu0 %v2421
        %v2423 = vpop.f32.mrb[0].mxu0
        %v2424 = vadd.f32 %v2224, %v2423
        %v2425 = vpop.f32.mrb[0].mxu0
        %2426 = vmatprep.mubr.f32.mxu0 0.0
        %v2427 = vand.u32 %v1590, 4294901760
        %v2428 = vsub.f32 %v1590, %v2427
        %v2429 = vand.u32 %v2428, 4294901760
        %2430 = vmatmul.mubr.f32.gmra.mrb[0].mxu0 %v2429
        %v2431 = vpop.f32.mrb[0].mxu0
        %v2432 = vadd.f32 %v2231, %v2431
        %v2433 = vpop.f32.mrb[0].mxu0
        %2434 = vmatprep.mubr.f32.mxu0 0.0
        %v2435 = vand.u32 %v1591, 4294901760
        %v2436 = vsub.f32 %v1591, %v2435
        %v2437 = vand.u32 %v2436, 4294901760
        %2438 = vmatmul.mubr.f32.gmra.mrb[0].mxu0 %v2437
        %v2439 = vpop.f32.mrb[0].mxu0
        %v2440 = vadd.f32 %v2238, %v2439
        %v2441 = vpop.f32.mrb[0].mxu0
        %2442 = vmatprep.mubr.f32.mxu0 0.0
        %v2443 = vand.u32 %v1592, 4294901760
        %v2444 = vsub.f32 %v1592, %v2443
        %v2445 = vand.u32 %v2444, 4294901760
        %2446 = vmatmul.mubr.f32.gmra.mrb[0].mxu0 %v2445
        %v2447 = vpop.f32.mrb[0].mxu0
        %v2448 = vadd.f32 %v2245, %v2447
        %v2449 = vpop.f32.mrb[0].mxu0
        %2450 = vmatprep.mubr.f32.mxu0 0.0
        %v2451 = vand.u32 %v1593, 4294901760
        %v2452 = vsub.f32 %v1593, %v2451
        %v2453 = vand.u32 %v2452, 4294901760
        %2454 = vmatmul.mubr.f32.gmra.mrb[0].mxu0 %v2453
        %v2455 = vpop.f32.mrb[0].mxu0
        %v2456 = vadd.f32 %v2252, %v2455
        %v2457 = vpop.f32.mrb[0].mxu0
        %2458 = vmatprep.mubr.f32.mxu0 0.0
        %v2459 = vand.u32 %v1594, 4294901760
        %v2460 = vsub.f32 %v1594, %v2459
        %v2461 = vand.u32 %v2460, 4294901760
        %2462 = vmatmul.mubr.f32.gmra.mrb[0].mxu0 %v2461
        %v2463 = vpop.f32.mrb[0].mxu0
        %v2464 = vadd.f32 %v2259, %v2463
        %v2465 = vpop.f32.mrb[0].mxu0
        %2466 = vmatprep.mubr.f32.mxu0 0.0
        %v2467 = vand.u32 %v1595, 4294901760
        %v2468 = vsub.f32 %v1595, %v2467
        %v2469 = vand.u32 %v2468, 4294901760
        %2470 = vmatmul.mubr.f32.gmra.mrb[0].mxu0 %v2469
        %v2471 = vpop.f32.mrb[0].mxu0
        %v2472 = vadd.f32 %v2266, %v2471
        %v2473 = vpop.f32.mrb[0].mxu0
        %2474 = vmatprep.mubr.f32.mxu0 0.0
        %v2475 = vand.u32 %v1596, 4294901760
        %v2476 = vsub.f32 %v1596, %v2475
        %v2477 = vand.u32 %v2476, 4294901760
        %2478 = vmatmul.mubr.f32.gmra.mrb[0].mxu0 %v2477
        %v2479 = vpop.f32.mrb[0].mxu0
        %v2480 = vadd.f32 %v2273, %v2479
        %v2481 = vpop.f32.mrb[0].mxu0
        %2482 = vmatprep.mubr.f32.mxu0 0.0
        %v2483 = vand.u32 %v1597, 4294901760
        %v2484 = vsub.f32 %v1597, %v2483
        %v2485 = vand.u32 %v2484, 4294901760
        %2486 = vmatmul.mubr.f32.gmra.mrb[0].mxu0 %v2485
        %v2487 = vpop.f32.mrb[0].mxu0
        %v2488 = vadd.f32 %v2280, %v2487
        %v2489 = vpop.f32.mrb[0].mxu0
        %2490 = vmatprep.mubr.f32.mxu0 0.0
        %v2491 = vand.u32 %v1598, 4294901760
        %v2492 = vsub.f32 %v1598, %v2491
        %v2493 = vand.u32 %v2492, 4294901760
        %2494 = vmatmul.mubr.f32.gmra.mrb[0].mxu0 %v2493
        %v2495 = vpop.f32.mrb[0].mxu0
        %v2496 = vadd.f32 %v2287, %v2495
        %v2497 = vpop.f32.mrb[0].mxu0
        %2498 = vdwg.mxu0
        %2499 = vmatprep.subr.mxu0 0.0
        %v2500 = vand.u32 %v249, 4294901760
        %v2501 = vsub.f32 %v249, %v2500
        %v2502 = vand.u32 %v2501, 4294901760
        %2503 = vmatpush1.msra.mxu0 %v2502
        %2504 = vmatprep.subr.mxu0 0.0
        %v2505 = vand.u32 %v250, 4294901760
        %v2506 = vsub.f32 %v250, %v2505
        %v2507 = vand.u32 %v2506, 4294901760
        %2508 = vmatpush1.msra.mxu0 %v2507
        %2509 = vmatprep.subr.mxu0 0.0
        %v2510 = vand.u32 %v251, 4294901760
        %v2511 = vsub.f32 %v251, %v2510
        %v2512 = vand.u32 %v2511, 4294901760
        %2513 = vmatpush1.msra.mxu0 %v2512
        %2514 = vmatprep.subr.mxu0 0.0
        %v2515 = vand.u32 %v252, 4294901760
        %v2516 = vsub.f32 %v252, %v2515
        %v2517 = vand.u32 %v2516, 4294901760
        %2518 = vmatpush1.msra.mxu0 %v2517
        %2519 = vmatprep.subr.mxu0 0.0
        %v2520 = vand.u32 %v253, 4294901760
        %v2521 = vsub.f32 %v253, %v2520
        %v2522 = vand.u32 %v2521, 4294901760
        %2523 = vmatpush1.msra.mxu0 %v2522
        %2524 = vmatprep.subr.mxu0 0.0
        %v2525 = vand.u32 %v254, 4294901760
        %v2526 = vsub.f32 %v254, %v2525
        %v2527 = vand.u32 %v2526, 4294901760
        %2528 = vmatpush1.msra.mxu0 %v2527
        %2529 = vmatprep.subr.mxu0 0.0
        %v2530 = vand.u32 %v255, 4294901760
        %v2531 = vsub.f32 %v255, %v2530
        %v2532 = vand.u32 %v2531, 4294901760
        %2533 = vmatpush1.msra.mxu0 %v2532
        %2534 = vmatprep.subr.mxu0 0.0
        %v2535 = vand.u32 %v256, 4294901760
        %v2536 = vsub.f32 %v256, %v2535
        %v2537 = vand.u32 %v2536, 4294901760
        %2538 = vmatpush1.msra.mxu0 %v2537
        %2539 = vmatprep.subr.mxu0 0.0
        %v2540 = vand.u32 %v257, 4294901760
        %v2541 = vsub.f32 %v257, %v2540
        %v2542 = vand.u32 %v2541, 4294901760
        %2543 = vmatpush1.msra.mxu0 %v2542
        %2544 = vmatprep.subr.mxu0 0.0
        %v2545 = vand.u32 %v258, 4294901760
        %v2546 = vsub.f32 %v258, %v2545
        %v2547 = vand.u32 %v2546, 4294901760
        %2548 = vmatpush1.msra.mxu0 %v2547
        %2549 = vmatprep.subr.mxu0 0.0
        %v2550 = vand.u32 %v259, 4294901760
        %v2551 = vsub.f32 %v259, %v2550
        %v2552 = vand.u32 %v2551, 4294901760
        %2553 = vmatpush1.msra.mxu0 %v2552
        %2554 = vmatprep.subr.mxu0 0.0
        %v2555 = vand.u32 %v260, 4294901760
        %v2556 = vsub.f32 %v260, %v2555
        %v2557 = vand.u32 %v2556, 4294901760
        %2558 = vmatpush1.msra.mxu0 %v2557
        %2559 = vmatprep.subr.mxu0 0.0
        %v2560 = vand.u32 %v261, 4294901760
        %v2561 = vsub.f32 %v261, %v2560
        %v2562 = vand.u32 %v2561, 4294901760
        %2563 = vmatpush1.msra.mxu0 %v2562
        %2564 = vmatprep.subr.mxu0 0.0
        %v2565 = vand.u32 %v262, 4294901760
        %v2566 = vsub.f32 %v262, %v2565
        %v2567 = vand.u32 %v2566, 4294901760
        %2568 = vmatpush1.msra.mxu0 %v2567
        %2569 = vmatprep.subr.mxu0 0.0
        %v2570 = vand.u32 %v263, 4294901760
        %v2571 = vsub.f32 %v263, %v2570
        %v2572 = vand.u32 %v2571, 4294901760
        %2573 = vmatpush1.msra.mxu0 %v2572
        %2574 = vmatprep.subr.mxu0 0.0
        %v2575 = vand.u32 %v264, 4294901760
        %v2576 = vsub.f32 %v264, %v2575
        %v2577 = vand.u32 %v2576, 4294901760
        %2578 = vmatpush1.msra.mxu0 %v2577
        %2579 = vmatprep.subr.mxu0 0.0
        %2580 = vmatpush1.msra.mxu0 0.0
        %2581 = vmatprep.subr.mxu0 0.0
        %2582 = vmatpush1.msra.mxu0 0.0
        %2583 = vmatprep.subr.mxu0 0.0
        %2584 = vmatpush1.msra.mxu0 0.0
        %2585 = vmatprep.subr.mxu0 0.0
        %2586 = vmatpush1.msra.mxu0 0.0
        %2587 = vmatprep.subr.mxu0 0.0
        %2588 = vmatpush1.msra.mxu0 0.0
        %2589 = vmatprep.subr.mxu0 0.0
        %2590 = vmatpush1.msra.mxu0 0.0
        %2591 = vmatprep.subr.mxu0 0.0
        %2592 = vmatpush1.msra.mxu0 0.0
        %2593 = vmatprep.subr.mxu0 0.0
        %2594 = vmatpush1.msra.mxu0 0.0
        %2595 = vmatprep.subr.mxu0 0.0
        %2596 = vmatpush1.msra.mxu0 0.0
        %2597 = vmatprep.subr.mxu0 0.0
        %2598 = vmatpush1.msra.mxu0 0.0
        %2599 = vmatprep.subr.mxu0 0.0
        %2600 = vmatpush1.msra.mxu0 0.0
        %2601 = vmatprep.subr.mxu0 0.0
        %2602 = vmatpush1.msra.mxu0 0.0
        %2603 = vmatprep.subr.mxu0 0.0
        %2604 = vmatpush1.msra.mxu0 0.0
        %2605 = vmatprep.subr.mxu0 0.0
        %2606 = vmatpush1.msra.mxu0 0.0
        %2607 = vmatprep.subr.mxu0 0.0
        %2608 = vmatpush1.msra.mxu0 0.0
        %2609 = vmatprep.subr.mxu0 0.0
        %2610 = vmatpush1.msra.mxu0 0.0
        %2611 = vmatprep.mubr.f32.mxu0 0.0
        %v2612 = vand.u32 %v1583, 4294901760
        %2613 = vmatmul.mubr.f32.gmra.mrb[0].mxu0 %v2612
        %v2614 = vpop.f32.mrb[0].mxu0
        %v2615 = vadd.f32 %v2376, %v2614
        %v2616 = vpop.f32.mrb[0].mxu0
        %2617 = vmatprep.mubr.f32.mxu0 0.0
        %v2618 = vand.u32 %v1584, 4294901760
        %2619 = vmatmul.mubr.f32.gmra.mrb[0].mxu0 %v2618
        %v2620 = vpop.f32.mrb[0].mxu0
        %v2621 = vadd.f32 %v2384, %v2620
        %v2622 = vpop.f32.mrb[0].mxu0
        %2623 = vmatprep.mubr.f32.mxu0 0.0
        %v2624 = vand.u32 %v1585, 4294901760
        %2625 = vmatmul.mubr.f32.gmra.mrb[0].mxu0 %v2624
        %v2626 = vpop.f32.mrb[0].mxu0
        %v2627 = vadd.f32 %v2392, %v2626
        %v2628 = vpop.f32.mrb[0].mxu0
        %2629 = vmatprep.mubr.f32.mxu0 0.0
        %v2630 = vand.u32 %v1586, 4294901760
        %2631 = vmatmul.mubr.f32.gmra.mrb[0].mxu0 %v2630
        %v2632 = vpop.f32.mrb[0].mxu0
        %v2633 = vadd.f32 %v2400, %v2632
        %v2634 = vpop.f32.mrb[0].mxu0
        %2635 = vmatprep.mubr.f32.mxu0 0.0
        %v2636 = vand.u32 %v1587, 4294901760
        %2637 = vmatmul.mubr.f32.gmra.mrb[0].mxu0 %v2636
        %v2638 = vpop.f32.mrb[0].mxu0
        %v2639 = vadd.f32 %v2408, %v2638
        %v2640 = vpop.f32.mrb[0].mxu0
        %2641 = vmatprep.mubr.f32.mxu0 0.0
        %v2642 = vand.u32 %v1588, 4294901760
        %2643 = vmatmul.mubr.f32.gmra.mrb[0].mxu0 %v2642
        %v2644 = vpop.f32.mrb[0].mxu0
        %v2645 = vadd.f32 %v2416, %v2644
        %v2646 = vpop.f32.mrb[0].mxu0
        %2647 = vmatprep.mubr.f32.mxu0 0.0
        %v2648 = vand.u32 %v1589, 4294901760
        %2649 = vmatmul.mubr.f32.gmra.mrb[0].mxu0 %v2648
        %v2650 = vpop.f32.mrb[0].mxu0
        %v2651 = vadd.f32 %v2424, %v2650
        %v2652 = vpop.f32.mrb[0].mxu0
        %2653 = vmatprep.mubr.f32.mxu0 0.0
        %v2654 = vand.u32 %v1590, 4294901760
        %2655 = vmatmul.mubr.f32.gmra.mrb[0].mxu0 %v2654
        %v2656 = vpop.f32.mrb[0].mxu0
        %v2657 = vadd.f32 %v2432, %v2656
        %v2658 = vpop.f32.mrb[0].mxu0
        %2659 = vmatprep.mubr.f32.mxu0 0.0
        %v2660 = vand.u32 %v1591, 4294901760
        %2661 = vmatmul.mubr.f32.gmra.mrb[0].mxu0 %v2660
        %v2662 = vpop.f32.mrb[0].mxu0
        %v2663 = vadd.f32 %v2440, %v2662
        %v2664 = vpop.f32.mrb[0].mxu0
        %2665 = vmatprep.mubr.f32.mxu0 0.0
        %v2666 = vand.u32 %v1592, 4294901760
        %2667 = vmatmul.mubr.f32.gmra.mrb[0].mxu0 %v2666
        %v2668 = vpop.f32.mrb[0].mxu0
        %v2669 = vadd.f32 %v2448, %v2668
        %v2670 = vpop.f32.mrb[0].mxu0
        %2671 = vmatprep.mubr.f32.mxu0 0.0
        %v2672 = vand.u32 %v1593, 4294901760
        %2673 = vmatmul.mubr.f32.gmra.mrb[0].mxu0 %v2672
        %v2674 = vpop.f32.mrb[0].mxu0
        %v2675 = vadd.f32 %v2456, %v2674
        %v2676 = vpop.f32.mrb[0].mxu0
        %2677 = vmatprep.mubr.f32.mxu0 0.0
        %v2678 = vand.u32 %v1594, 4294901760
        %2679 = vmatmul.mubr.f32.gmra.mrb[0].mxu0 %v2678
        %v2680 = vpop.f32.mrb[0].mxu0
        %v2681 = vadd.f32 %v2464, %v2680
        %v2682 = vpop.f32.mrb[0].mxu0
        %2683 = vmatprep.mubr.f32.mxu0 0.0
        %v2684 = vand.u32 %v1595, 4294901760
        %2685 = vmatmul.mubr.f32.gmra.mrb[0].mxu0 %v2684
        %v2686 = vpop.f32.mrb[0].mxu0
        %v2687 = vadd.f32 %v2472, %v2686
        %v2688 = vpop.f32.mrb[0].mxu0
        %2689 = vmatprep.mubr.f32.mxu0 0.0
        %v2690 = vand.u32 %v1596, 4294901760
        %2691 = vmatmul.mubr.f32.gmra.mrb[0].mxu0 %v2690
        %v2692 = vpop.f32.mrb[0].mxu0
        %v2693 = vadd.f32 %v2480, %v2692
        %v2694 = vpop.f32.mrb[0].mxu0
        %2695 = vmatprep.mubr.f32.mxu0 0.0
        %v2696 = vand.u32 %v1597, 4294901760
        %2697 = vmatmul.mubr.f32.gmra.mrb[0].mxu0 %v2696
        %v2698 = vpop.f32.mrb[0].mxu0
        %v2699 = vadd.f32 %v2488, %v2698
        %v2700 = vpop.f32.mrb[0].mxu0
        %2701 = vmatprep.mubr.f32.mxu0 0.0
        %v2702 = vand.u32 %v1598, 4294901760
        %2703 = vmatmul.mubr.f32.gmra.mrb[0].mxu0 %v2702
        %v2704 = vpop.f32.mrb[0].mxu0
        %v2705 = vadd.f32 %v2496, %v2704
        %v2706 = vpop.f32.mrb[0].mxu0
        %2707 = vdwg.mxu0
        %2708 = vmatprep.subr.mxu0 0.0
        %v2709 = vand.u32 %v249, 4294901760
        %2710 = vmatpush1.msra.mxu0 %v2709
        %2711 = vmatprep.subr.mxu0 0.0
        %v2712 = vand.u32 %v250, 4294901760
        %2713 = vmatpush1.msra.mxu0 %v2712
        %2714 = vmatprep.subr.mxu0 0.0
        %v2715 = vand.u32 %v251, 4294901760
        %2716 = vmatpush1.msra.mxu0 %v2715
        %2717 = vmatprep.subr.mxu0 0.0
        %v2718 = vand.u32 %v252, 4294901760
        %2719 = vmatpush1.msra.mxu0 %v2718
        %2720 = vmatprep.subr.mxu0 0.0
        %v2721 = vand.u32 %v253, 4294901760
        %2722 = vmatpush1.msra.mxu0 %v2721
        %2723 = vmatprep.subr.mxu0 0.0
        %v2724 = vand.u32 %v254, 4294901760
        %2725 = vmatpush1.msra.mxu0 %v2724
        %2726 = vmatprep.subr.mxu0 0.0
        %v2727 = vand.u32 %v255, 4294901760
        %2728 = vmatpush1.msra.mxu0 %v2727
        %2729 = vmatprep.subr.mxu0 0.0
        %v2730 = vand.u32 %v256, 4294901760
        %2731 = vmatpush1.msra.mxu0 %v2730
        %2732 = vmatprep.subr.mxu0 0.0
        %v2733 = vand.u32 %v257, 4294901760
        %2734 = vmatpush1.msra.mxu0 %v2733
        %2735 = vmatprep.subr.mxu0 0.0
        %v2736 = vand.u32 %v258, 4294901760
        %2737 = vmatpush1.msra.mxu0 %v2736
        %2738 = vmatprep.subr.mxu0 0.0
        %v2739 = vand.u32 %v259, 4294901760
        %2740 = vmatpush1.msra.mxu0 %v2739
        %2741 = vmatprep.subr.mxu0 0.0
        %v2742 = vand.u32 %v260, 4294901760
        %2743 = vmatpush1.msra.mxu0 %v2742
        %2744 = vmatprep.subr.mxu0 0.0
        %v2745 = vand.u32 %v261, 4294901760
        %2746 = vmatpush1.msra.mxu0 %v2745
        %2747 = vmatprep.subr.mxu0 0.0
        %v2748 = vand.u32 %v262, 4294901760
        %2749 = vmatpush1.msra.mxu0 %v2748
        %2750 = vmatprep.subr.mxu0 0.0
        %v2751 = vand.u32 %v263, 4294901760
        %2752 = vmatpush1.msra.mxu0 %v2751
        %2753 = vmatprep.subr.mxu0 0.0
        %v2754 = vand.u32 %v264, 4294901760
        %2755 = vmatpush1.msra.mxu0 %v2754
        %2756 = vmatprep.subr.mxu0 0.0
        %2757 = vmatpush1.msra.mxu0 0.0
        %2758 = vmatprep.subr.mxu0 0.0
        %2759 = vmatpush1.msra.mxu0 0.0
        %2760 = vmatprep.subr.mxu0 0.0
        %2761 = vmatpush1.msra.mxu0 0.0
        %2762 = vmatprep.subr.mxu0 0.0
        %2763 = vmatpush1.msra.mxu0 0.0
        %2764 = vmatprep.subr.mxu0 0.0
        %2765 = vmatpush1.msra.mxu0 0.0
        %2766 = vmatprep.subr.mxu0 0.0
        %2767 = vmatpush1.msra.mxu0 0.0
        %2768 = vmatprep.subr.mxu0 0.0
        %2769 = vmatpush1.msra.mxu0 0.0
        %2770 = vmatprep.subr.mxu0 0.0
        %2771 = vmatpush1.msra.mxu0 0.0
        %2772 = vmatprep.subr.mxu0 0.0
        %2773 = vmatpush1.msra.mxu0 0.0
        %2774 = vmatprep.subr.mxu0 0.0
        %2775 = vmatpush1.msra.mxu0 0.0
        %2776 = vmatprep.subr.mxu0 0.0
        %2777 = vmatpush1.msra.mxu0 0.0
        %2778 = vmatprep.subr.mxu0 0.0
        %2779 = vmatpush1.msra.mxu0 0.0
        %2780 = vmatprep.subr.mxu0 0.0
        %2781 = vmatpush1.msra.mxu0 0.0
        %2782 = vmatprep.subr.mxu0 0.0
        %2783 = vmatpush1.msra.mxu0 0.0
        %2784 = vmatprep.subr.mxu0 0.0
        %2785 = vmatpush1.msra.mxu0 0.0
        %2786 = vmatprep.subr.mxu0 0.0
        %2787 = vmatpush1.msra.mxu0 0.0
        %2788 = vmatprep.mubr.f32.mxu0 0.0
        %v2789 = vand.u32 %v1583, 4294901760
        %2790 = vmatmul.mubr.f32.gmra.mrb[0].mxu0 %v2789
        %v2791 = vpop.f32.mrb[0].mxu0
        %v2792 = vadd.f32 %v2615, %v2791
        %v2793 = vpop.f32.mrb[0].mxu0
        %2794 = vmatprep.mubr.f32.mxu0 0.0
        %v2795 = vand.u32 %v1584, 4294901760
        %2796 = vmatmul.mubr.f32.gmra.mrb[0].mxu0 %v2795
        %v2797 = vpop.f32.mrb[0].mxu0
        %v2798 = vadd.f32 %v2621, %v2797
        %v2799 = vpop.f32.mrb[0].mxu0
        %2800 = vmatprep.mubr.f32.mxu0 0.0
        %v2801 = vand.u32 %v1585, 4294901760
        %2802 = vmatmul.mubr.f32.gmra.mrb[0].mxu0 %v2801
        %v2803 = vpop.f32.mrb[0].mxu0
        %v2804 = vadd.f32 %v2627, %v2803
        %v2805 = vpop.f32.mrb[0].mxu0
        %2806 = vmatprep.mubr.f32.mxu0 0.0
        %v2807 = vand.u32 %v1586, 4294901760
        %2808 = vmatmul.mubr.f32.gmra.mrb[0].mxu0 %v2807
        %v2809 = vpop.f32.mrb[0].mxu0
        %v2810 = vadd.f32 %v2633, %v2809
        %v2811 = vpop.f32.mrb[0].mxu0
        %2812 = vmatprep.mubr.f32.mxu0 0.0
        %v2813 = vand.u32 %v1587, 4294901760
        %2814 = vmatmul.mubr.f32.gmra.mrb[0].mxu0 %v2813
        %v2815 = vpop.f32.mrb[0].mxu0
        %v2816 = vadd.f32 %v2639, %v2815
        %v2817 = vpop.f32.mrb[0].mxu0
        %2818 = vmatprep.mubr.f32.mxu0 0.0
        %v2819 = vand.u32 %v1588, 4294901760
        %2820 = vmatmul.mubr.f32.gmra.mrb[0].mxu0 %v2819
        %v2821 = vpop.f32.mrb[0].mxu0
        %v2822 = vadd.f32 %v2645, %v2821
        %v2823 = vpop.f32.mrb[0].mxu0
        %2824 = vmatprep.mubr.f32.mxu0 0.0
        %v2825 = vand.u32 %v1589, 4294901760
        %2826 = vmatmul.mubr.f32.gmra.mrb[0].mxu0 %v2825
        %v2827 = vpop.f32.mrb[0].mxu0
        %v2828 = vadd.f32 %v2651, %v2827
        %v2829 = vpop.f32.mrb[0].mxu0
        %2830 = vmatprep.mubr.f32.mxu0 0.0
        %v2831 = vand.u32 %v1590, 4294901760
        %2832 = vmatmul.mubr.f32.gmra.mrb[0].mxu0 %v2831
        %v2833 = vpop.f32.mrb[0].mxu0
        %v2834 = vadd.f32 %v2657, %v2833
        %v2835 = vpop.f32.mrb[0].mxu0
        %2836 = vmatprep.mubr.f32.mxu0 0.0
        %v2837 = vand.u32 %v1591, 4294901760
        %2838 = vmatmul.mubr.f32.gmra.mrb[0].mxu0 %v2837
        %v2839 = vpop.f32.mrb[0].mxu0
        %v2840 = vadd.f32 %v2663, %v2839
        %v2841 = vpop.f32.mrb[0].mxu0
        %2842 = vmatprep.mubr.f32.mxu0 0.0
        %v2843 = vand.u32 %v1592, 4294901760
        %2844 = vmatmul.mubr.f32.gmra.mrb[0].mxu0 %v2843
        %v2845 = vpop.f32.mrb[0].mxu0
        %v2846 = vadd.f32 %v2669, %v2845
        %v2847 = vpop.f32.mrb[0].mxu0
        %2848 = vmatprep.mubr.f32.mxu0 0.0
        %v2849 = vand.u32 %v1593, 4294901760
        %2850 = vmatmul.mubr.f32.gmra.mrb[0].mxu0 %v2849
        %v2851 = vpop.f32.mrb[0].mxu0
        %v2852 = vadd.f32 %v2675, %v2851
        %v2853 = vpop.f32.mrb[0].mxu0
        %2854 = vmatprep.mubr.f32.mxu0 0.0
        %v2855 = vand.u32 %v1594, 4294901760
        %2856 = vmatmul.mubr.f32.gmra.mrb[0].mxu0 %v2855
        %v2857 = vpop.f32.mrb[0].mxu0
        %v2858 = vadd.f32 %v2681, %v2857
        %v2859 = vpop.f32.mrb[0].mxu0
        %2860 = vmatprep.mubr.f32.mxu0 0.0
        %v2861 = vand.u32 %v1595, 4294901760
        %2862 = vmatmul.mubr.f32.gmra.mrb[0].mxu0 %v2861
        %v2863 = vpop.f32.mrb[0].mxu0
        %v2864 = vadd.f32 %v2687, %v2863
        %v2865 = vpop.f32.mrb[0].mxu0
        %2866 = vmatprep.mubr.f32.mxu0 0.0
        %v2867 = vand.u32 %v1596, 4294901760
        %2868 = vmatmul.mubr.f32.gmra.mrb[0].mxu0 %v2867
        %v2869 = vpop.f32.mrb[0].mxu0
        %v2870 = vadd.f32 %v2693, %v2869
        %v2871 = vpop.f32.mrb[0].mxu0
        %2872 = vmatprep.mubr.f32.mxu0 0.0
        %v2873 = vand.u32 %v1597, 4294901760
        %2874 = vmatmul.mubr.f32.gmra.mrb[0].mxu0 %v2873
        %v2875 = vpop.f32.mrb[0].mxu0
        %v2876 = vadd.f32 %v2699, %v2875
        %v2877 = vpop.f32.mrb[0].mxu0
        %2878 = vmatprep.mubr.f32.mxu0 0.0
        %v2879 = vand.u32 %v1598, 4294901760
        %2880 = vmatmul.mubr.f32.gmra.mrb[0].mxu0 %v2879
        %v2881 = vpop.f32.mrb[0].mxu0
        %v2882 = vadd.f32 %v2705, %v2881
        %v2883 = vpop.f32.mrb[0].mxu0
        %2884 = vdwg.mxu0
        %v2885 = vmul.f32 %v2792, 0.015625
        %v2886 = vmul.f32 %v2798, 0.015625
        %v2887 = vmul.f32 %v2804, 0.015625
        %v2888 = vmul.f32 %v2810, 0.015625
        %v2889 = vmul.f32 %v2816, 0.015625
        %v2890 = vmul.f32 %v2822, 0.015625
        %v2891 = vmul.f32 %v2828, 0.015625
        %v2892 = vmul.f32 %v2834, 0.015625
        %v2893 = vmul.f32 %v2840, 0.015625
        %v2894 = vmul.f32 %v2846, 0.015625
        %v2895 = vmul.f32 %v2852, 0.015625
        %v2896 = vmul.f32 %v2858, 0.015625
        %v2897 = vmul.f32 %v2864, 0.015625
        %v2898 = vmul.f32 %v2870, 0.015625
        %v2899 = vmul.f32 %v2876, 0.015625
        %v2900 = vmul.f32 %v2882, 0.015625
        %v2901 = vadd.f32 %v2885, 1e-05
        %v2902 = vadd.f32 %v2886, 1e-05
        %v2903 = vadd.f32 %v2887, 1e-05
        %v2904 = vadd.f32 %v2888, 1e-05
        %v2905 = vadd.f32 %v2889, 1e-05
        %v2906 = vadd.f32 %v2890, 1e-05
        %v2907 = vadd.f32 %v2891, 1e-05
        %v2908 = vadd.f32 %v2892, 1e-05
        %v2909 = vadd.f32 %v2893, 1e-05
        %v2910 = vadd.f32 %v2894, 1e-05
        %v2911 = vadd.f32 %v2895, 1e-05
        %v2912 = vadd.f32 %v2896, 1e-05
        %v2913 = vadd.f32 %v2897, 1e-05
        %v2914 = vadd.f32 %v2898, 1e-05
        %v2915 = vadd.f32 %v2899, 1e-05
        %v2916 = vadd.f32 %v2900, 1e-05
        %v2917 = vrsqrt.pop %v2901
        %v2918 = vrsqrt.pop %v2902
        %v2919 = vrsqrt.pop %v2903
        %v2920 = vrsqrt.pop %v2904
        %v2921 = vrsqrt.pop %v2905
        %v2922 = vrsqrt.pop %v2906
        %v2923 = vrsqrt.pop %v2907
        %v2924 = vrsqrt.pop %v2908
        %v2925 = vrsqrt.pop %v2909
        %v2926 = vrsqrt.pop %v2910
        %v2927 = vrsqrt.pop %v2911
        %v2928 = vrsqrt.pop %v2912
        %v2929 = vrsqrt.pop %v2913
        %v2930 = vrsqrt.pop %v2914
        %v2931 = vrsqrt.pop %v2915
        %v2932 = vrsqrt.pop %v2916
        %v2933 = vmul.f32 %v1567, %v2917
        %v2934 = vmul.f32 %v1568, %v2918
        %v2935 = vmul.f32 %v1569, %v2919
        %v2936 = vmul.f32 %v1570, %v2920
        %v2937 = vmul.f32 %v1571, %v2921
        %v2938 = vmul.f32 %v1572, %v2922
        %v2939 = vmul.f32 %v1573, %v2923
        %v2940 = vmul.f32 %v1574, %v2924
        %v2941 = vmul.f32 %v1575, %v2925
        %v2942 = vmul.f32 %v1576, %v2926
        %v2943 = vmul.f32 %v1577, %v2927
        %v2944 = vmul.f32 %v1578, %v2928
        %v2945 = vmul.f32 %v1579, %v2929
        %v2946 = vmul.f32 %v1580, %v2930
        %v2947 = vmul.f32 %v1581, %v2931
        %v2948 = vmul.f32 %v1582, %v2932
        %v2949 = vld [vmem:[%s1] sm:$0x1]
        %v2951 = vlaneseq
        %v2952 = vshrl.u32 %v2951, 7
        %v2953 = vsub.s32 0, %v2952
        %v2954 = vrot.slane %v2949, %v2953
        %v2956 = vmul.f32 %v2933, %v2954
        %v2957 = vmul.f32 %v2934, %v2954
        %v2958 = vmul.f32 %v2935, %v2954
        %v2959 = vmul.f32 %v2936, %v2954
        %v2960 = vmul.f32 %v2937, %v2954
        %v2961 = vmul.f32 %v2938, %v2954
        %v2962 = vmul.f32 %v2939, %v2954
        %v2963 = vmul.f32 %v2940, %v2954
        %v2964 = vmul.f32 %v2941, %v2954
        %v2965 = vmul.f32 %v2942, %v2954
        %v2966 = vmul.f32 %v2943, %v2954
        %v2967 = vmul.f32 %v2944, %v2954
        %v2968 = vmul.f32 %v2945, %v2954
        %v2969 = vmul.f32 %v2946, %v2954
        %v2970 = vmul.f32 %v2947, %v2954
        %v2971 = vmul.f32 %v2948, %v2954
        %v2972 = vld [vmem:[%s2] sm:$0x1]
        %v2974 = vlaneseq
        %v2975 = vshrl.u32 %v2974, 7
        %v2976 = vsub.s32 0, %v2975
        %v2977 = vrot.slane %v2972, %v2976
        %v2979 = vadd.f32 %v2956, %v2977
        %v2980 = vadd.f32 %v2957, %v2977
        %v2981 = vadd.f32 %v2958, %v2977
        %v2982 = vadd.f32 %v2959, %v2977
        %v2983 = vadd.f32 %v2960, %v2977
        %v2984 = vadd.f32 %v2961, %v2977
        %v2985 = vadd.f32 %v2962, %v2977
        %v2986 = vadd.f32 %v2963, %v2977
        %v2987 = vadd.f32 %v2964, %v2977
        %v2988 = vadd.f32 %v2965, %v2977
        %v2989 = vadd.f32 %v2966, %v2977
        %v2990 = vadd.f32 %v2967, %v2977
        %v2991 = vadd.f32 %v2968, %v2977
        %v2992 = vadd.f32 %v2969, %v2977
        %v2993 = vadd.f32 %v2970, %v2977
        %v2994 = vadd.f32 %v2971, %v2977
        %2995 = vst [vmem:[%s230] sm:$0xff] %v2979
        %2996 = vst [vmem:[%s230 + $0x8] sm:$0xff] %v2980
        %2997 = vst [vmem:[%s230 + $0x10] sm:$0xff] %v2981
        %2998 = vst [vmem:[%s230 + $0x18] sm:$0xff] %v2982
        %2999 = vst [vmem:[%s230 + $0x20] sm:$0xff] %v2983
        %3000 = vst [vmem:[%s230 + $0x28] sm:$0xff] %v2984
        %3001 = vst [vmem:[%s230 + $0x30] sm:$0xff] %v2985
        %3002 = vst [vmem:[%s230 + $0x38] sm:$0xff] %v2986
        %3003 = vst [vmem:[%s230 + $0x40] sm:$0xff] %v2987
        %3004 = vst [vmem:[%s230 + $0x48] sm:$0xff] %v2988
        %3005 = vst [vmem:[%s230 + $0x50] sm:$0xff] %v2989
        %3006 = vst [vmem:[%s230 + $0x58] sm:$0xff] %v2990
        %3007 = vst [vmem:[%s230 + $0x60] sm:$0xff] %v2991
        %3008 = vst [vmem:[%s230 + $0x68] sm:$0xff] %v2992
        %3009 = vst [vmem:[%s230 + $0x70] sm:$0xff] %v2993
        %3010 = vst [vmem:[%s230 + $0x78] sm:$0xff] %v2994
        %s3011 = sand.u32 %s119, 1
        %s3012 = scalar_lea.sflag [#allocation4], %s3011
        %s3013 = sand.u32 %s119, 1
        %s3014 = smul.addr %s3013, 128
        %s3015 = scalar_lea.vmem [#allocation7], %s3014
        // Predicated region
        $region45: #{tpu_custom_call.1} parent=35 // pred_check
          %p3016 = pneg %p129
        $region46: #{tpu_custom_call.1} parent=35 // pred_check_branch
          %3018 = sbr.rel (%p3016) target = $region48
        $region47: #{tpu_custom_call.1} parent=35 // pred_region
          %s3019 = smul.u32 16, %s22
          %s3021 = ssub.s32 2048, 2048
          %3022 = vsyncadd %s3012, %s3021
          %s3023 = smul.addr %s3019, 128
          %s3024 = scalar_lea.hbm %s4, %s3023
          %s3025 = sshll.u32 %s3015, 4
          %s3026 = int_to_ptr.vmem [resolvable:$true] %s3025
          %3031 = dma.vmem_to_hbm [thread:$0]  %s3026, 2048, %s3024, %s3012, 128, 128, 8
        $region48: #{tpu_custom_call.1} parent=35 // pred_fallthru
          _
      $region36: #{tpu_custom_call.1} parent=5 // pred_fallthru
        _
      %p3032 = scmp.le.s32.totalorder 2, %s17
      // Predicated region
      $region49: #{tpu_custom_call.1} parent=5 // pred_check
        %p3033 = pneg %p3032
      $region50: #{tpu_custom_call.1} parent=5 // pred_check_branch
        %3035 = sbr.rel (%p3033) target = $region52
      $region51: #{tpu_custom_call.1} parent=5 // pred_region
        %s3036 = ssub.s32 %s17, 2
        // Predicated region
        $region53: #{tpu_custom_call.1} parent=51 // pred_check
          %p3037 = pneg %p135
        $region54: #{tpu_custom_call.1} parent=51 // pred_check_branch
          %3039 = sbr.rel (%p3037) target = $region56
        $region55: #{tpu_custom_call.1} parent=51 // pred_region
          %s3040 = sand.u32 %s120, 1
          %s3041 = scalar_lea.sflag [#allocation4], %s3040
          %s3042 = sand.u32 %s120, 1
          %s3043 = smul.addr %s3042, 128
          %s3044 = scalar_lea.vmem [#allocation7], %s3043
          %3045 = dma.done %s3041, 2048
        $region56: #{tpu_custom_call.1} parent=51 // pred_fallthru
          _
      $region52: #{tpu_custom_call.1} parent=5 // pred_fallthru
        _
    $region6: #{tpu_custom_call.1} parent=1 // loop_footer
      %s21 = sadd.s32 1, %s17
    $region7: #{tpu_custom_call.1} parent=1 // loop_footer_branch
      %16 = sbr.rel target = $region3
    $region8: #{tpu_custom_call.1} parent=1 // loop_exit
      _
    %3046 = vsyncpa [#allocation3], 1
    %s3047 = scalar_lea.sflag [#allocation3], 1
    %3048 = vsyncpa %s3047, 1
    %3049 = vsyncpa [#allocation6], 1
    %3050 = vsyncpa [#allocation4], 1
    %s3051 = scalar_lea.sflag [#allocation4], 1
    %3052 = vsyncpa %s3051, 1

</llo_original>
